<compile_context>
chip_gen: v6e
topology: v6e:2x2x1
jax: 0.10.0
libtpu: 0.0.40
codegen_flags: <defaults>
</compile_context>

<pallas_src>
import functools

import jax
import jax.numpy as jnp
from jax.experimental import pallas as pl
from jax.experimental.pallas import tpu as pltpu


# -----------------------------------------------------------------------------
# Fused Pallas kernel: SSD box decode + full pairwise IoU (per batch element)
# -----------------------------------------------------------------------------
def _decode_iou_kernel(loc_cm_ref, pri_cm_ref, loc_pm_ref, pri_pm_ref,
                       box_ref, iou_ref, *, var0, var1, row_block):
    """loc_cm_ref (1,4,P) / pri_cm_ref (4,P): coordinate-major inputs.
       loc_pm_ref (1,P,4) / pri_pm_ref (P,4): native prior-major inputs.
       box_ref (1,4,P): decoded corner boxes (coordinate-major, lane-dense).
       iou_ref (1,P,P): pairwise IoU matrix."""
    # ---- decode, coordinate-major -> corner "row" operands of shape (1, P).
    l = loc_cm_ref[0]                     # (4, P)
    pr = pri_cm_ref[...]                  # (4, P)
    cx = pr[0:1, :] + l[0:1, :] * var0 * pr[2:3, :]
    cy = pr[1:2, :] + l[1:2, :] * var0 * pr[3:4, :]
    w = pr[2:3, :] * jnp.exp(l[2:3, :] * var1)
    h = pr[3:4, :] * jnp.exp(l[3:4, :] * var1)
    x1r = cx - 0.5 * w
    y1r = cy - 0.5 * h
    x2r = x1r + w
    y2r = y1r + h
    # Direct lane-dense row stores (no sublane-axis concatenate).
    box_ref[0, 0:1, :] = x1r
    box_ref[0, 1:2, :] = y1r
    box_ref[0, 2:3, :] = x2r
    box_ref[0, 3:4, :] = y2r
    area_r = (x2r - x1r) * (y2r - y1r)    # (1, P)

    pnum = pri_cm_ref.shape[1]
    # ---- IoU, row-blocked to bound vreg live ranges. The sublane-varying
    # "column" corner operands (R,1) are re-decoded from the native prior-major
    # inputs inside the loop: no in-kernel transpose, per-block loads only.
    for start in range(0, pnum, row_block):
        lpm = loc_pm_ref[0, start:start + row_block, :]     # (R, 4)
        ppm = pri_pm_ref[start:start + row_block, :]        # (R, 4)
        cxc = ppm[:, 0:1] + lpm[:, 0:1] * var0 * ppm[:, 2:3]
        cyc = ppm[:, 1:2] + lpm[:, 1:2] * var0 * ppm[:, 3:4]
        wc = ppm[:, 2:3] * jnp.exp(lpm[:, 2:3] * var1)
        hc = ppm[:, 3:4] * jnp.exp(lpm[:, 3:4] * var1)
        x1c = cxc - 0.5 * wc
        y1c = cyc - 0.5 * hc
        x2c = x1c + wc
        y2c = y1c + hc
        area_c = (x2c - x1c) * (y2c - y1c)                  # (R, 1)

        xx1 = jnp.maximum(x1c, x1r)                         # (R, P)
        yy1 = jnp.maximum(y1c, y1r)
        xx2 = jnp.minimum(x2c, x2r)
        yy2 = jnp.minimum(y2c, y2r)
        iw = jnp.maximum(xx2 - xx1, 0.0)
        ih = jnp.maximum(yy2 - yy1, 0.0)
        inter = iw * ih
        # eps guard: avoids 0/0 NaN for degenerate zero-area box pairs; the
        # resulting IoU of 0 means "not suppressed", same as the NaN compare
        # in the reference.
        union = jnp.maximum(area_c + area_r - inter, 1e-12)
        # Approx reciprocal runs on the EUP slot (VALU stays free for the
        # max/min/mul chain). IoU is only compared against nms_thresh, so the
        # small relative error is acceptable.
        iou_ref[0, start:start + row_block, :] = inter * pl.reciprocal(
            union, approx=True)


def _pick_row_block(p, preferred=32):
    rb = min(preferred, p)
    while rb > 1 and p % rb:
        rb //= 2
    return max(rb, 1)


def decode_and_iou(loc_cm, pri_cm, loc_pm, pri_pm, variance):
    """loc_cm (N,4,P), pri_cm (4,P), loc_pm (N,P,4), pri_pm (P,4)
       -> boxes_cm (N,4,P) corner form, iou (N,P,P)."""
    n, _, p = loc_cm.shape
    kernel = functools.partial(
        _decode_iou_kernel,
        var0=float(variance[0]),
        var1=float(variance[1]),
        row_block=_pick_row_block(p),
    )
    return pl.pallas_call(
        kernel,
        out_shape=(
            jax.ShapeDtypeStruct((n, 4, p), jnp.float32),
            jax.ShapeDtypeStruct((n, p, p), jnp.float32),
        ),
        grid=(n,),
        in_specs=[
            pl.BlockSpec((1, 4, p), lambda i: (i, 0, 0)),
            pl.BlockSpec((4, p), lambda i: (0, 0)),
            pl.BlockSpec((1, p, 4), lambda i: (i, 0, 0)),
            pl.BlockSpec((p, 4), lambda i: (0, 0)),
        ],
        out_specs=(
            pl.BlockSpec((1, 4, p), lambda i: (i, 0, 0)),
            pl.BlockSpec((1, p, p), lambda i: (i, 0, 0)),
        ),
        # batch grid stays "parallel" so v7x's two TensorCores split the batch;
        # on single-TC v5e/v6e the per-step overhead at these sizes is tiny.
        compiler_params=pltpu.CompilerParams(dimension_semantics=("parallel",)),
    )(loc_cm, pri_cm, loc_pm, pri_pm)


# -----------------------------------------------------------------------------
# JAX glue: per-class greedy NMS over the top_k candidates (tiny, sequential)
# -----------------------------------------------------------------------------
def _nms_one_class(scores, boxes, iou, *, conf_thresh, nms_thresh, top_k):
    # scores: (P,), boxes: (P, 4), iou: (P, P)  ->  (top_k, 5) rows (score, x1,y1,x2,y2)
    k = top_k
    neg = jnp.float32(-1e30)
    valid = scores > conf_thresh
    masked = jnp.where(valid, scores, neg)
    order = jnp.argsort(-masked)[:k]            # top_k candidates, score-descending
    cand_scores = scores[order]                 # (k,)
    cand_valid = valid[order]                   # (k,)
    cand_boxes = boxes[order]                   # (k, 4)
    iou_sub = iou[order][:, order]              # (k, k)
    lanes = jnp.arange(k)

    def body(j, carry):
        keep, suppressed = carry
        is_kept = cand_valid[j] & jnp.logical_not(suppressed[j])
        keep = keep.at[j].set(is_kept)
        suppressed = suppressed | (is_kept & (lanes > j) & (iou_sub[j] > nms_thresh))
        return keep, suppressed

    keep, _ = jax.lax.fori_loop(
        0, k, body, (jnp.zeros((k,), bool), jnp.zeros((k,), bool))
    )
    # Compact kept rows to the front; non-kept rows scatter into a padded slot.
    pos = jnp.where(keep, jnp.cumsum(keep) - 1, k)
    rows = jnp.concatenate([cand_scores[:, None], cand_boxes], axis=1)  # (k, 5)
    out = jnp.zeros((k + 1, 5), jnp.float32).at[pos].set(rows)
    return out[:k]


# -----------------------------------------------------------------------------
# Detect.forward
# -----------------------------------------------------------------------------
def detect_forward(loc_data, conf_data, prior_data, *, num_classes, top_k,
                   conf_thresh, nms_thresh, variance):
    """loc_data (N, P, 4), conf_data (N*P, C), prior_data (P, 4) -> (N, C, top_k, 5)."""
    n, p, _ = loc_data.shape
    c = num_classes

    loc_pm = loc_data.astype(jnp.float32)                                # (N, P, 4) native
    pri_pm = prior_data.astype(jnp.float32)                              # (P, 4)  native
    loc_cm = jnp.transpose(loc_pm, (0, 2, 1))                            # (N, 4, P) tiny
    pri_cm = jnp.transpose(pri_pm, (1, 0))                               # (4, P)   tiny

    boxes_cm, iou = decode_and_iou(loc_cm, pri_cm, loc_pm, pri_pm, variance)
    boxes_pm = jnp.transpose(boxes_cm, (0, 2, 1))                        # (N, P, 4) for gathers

    # conf_preds = conf.view(N, P, C).transpose(2, 1) -> (N, C, P)
    conf_preds = jnp.transpose(conf_data.reshape(n, p, c), (0, 2, 1)).astype(jnp.float32)

    nms_fn = functools.partial(
        _nms_one_class, conf_thresh=conf_thresh, nms_thresh=nms_thresh, top_k=top_k
    )
    per_class = jax.vmap(nms_fn, in_axes=(0, None, None))        # over classes
    per_batch = jax.vmap(per_class, in_axes=(0, 0, 0))           # over batch
    out_fg = per_batch(conf_preds[:, 1:, :], boxes_pm, iou)      # (N, C-1, K, 5)

    background = jnp.zeros((n, 1, top_k, 5), jnp.float32)
    output = jnp.concatenate([background, out_fg], axis=1)       # (N, C, K, 5)
    # Final `flt` rank filter in the reference is a no-op (fill on an indexing
    # copy), so output is returned as-is.
    return output


if __name__ == "__main__":
    N, P, C, TOP_K = 2, 128, 4, 8
    CONF_THRESH, NMS_THRESH = 0.2, 0.45
    VARIANCE = (0.1, 0.2)

    key = jax.random.PRNGKey(0)
    k_loc, k_conf, k_pc, k_ps = jax.random.split(key, 4)

    # Priors in (cx, cy, w, h) form.
    centers = jax.random.uniform(k_pc, (P, 2), jnp.float32, 0.1, 0.9)
    sizes = jax.random.uniform(k_ps, (P, 2), jnp.float32, 0.05, 0.3)
    prior_data = jnp.concatenate([centers, sizes], axis=1)               # (P, 4)

    loc_data = 0.5 * jax.random.normal(k_loc, (N, P, 4), jnp.float32)    # (N, P, 4)
    conf_data = jax.random.uniform(k_conf, (N * P, C), jnp.float32)      # (N*P, C)

    out = detect_forward(
        loc_data, conf_data, prior_data,
        num_classes=C, top_k=TOP_K,
        conf_thresh=CONF_THRESH, nms_thresh=NMS_THRESH, variance=VARIANCE,
    )
    out = jax.block_until_ready(out)
    assert out.shape == (N, C, TOP_K, 5), out.shape
    print("KERNEL_OK")
</pallas_src>

<mosaic_0001>
module attributes {stable_mosaic.version = 11 : i64} {
  func.func @_decode_iou_kernel(%arg0: i32, %arg1: memref<1x4x128xf32, #tpu.memory_space<vmem>>, %arg2: memref<4x128xf32, #tpu.memory_space<vmem>>, %arg3: memref<1x128x4xf32, #tpu.memory_space<vmem>>, %arg4: memref<128x4xf32, #tpu.memory_space<vmem>>, %arg5: memref<1x4x128xf32, #tpu.memory_space<vmem>>, %arg6: memref<1x128x128xf32, #tpu.memory_space<vmem>>) attributes {dimension_semantics = [#tpu.dimension_semantics<parallel>], iteration_bounds = array<i64: 2>, scalar_prefetch = 0 : i64, scratch_operands = 0 : i64, tpu.core_type = #tpu.core_type<tc>, window_params = [{transform_indices = @transform_0, window_bounds = array<i64: 1, 4, 128>}, {pipeline_mode = #tpu.pipeline_mode<synchronous>, transform_indices = @transform_1, window_bounds = array<i64: 4, 128>}, {transform_indices = @transform_2, window_bounds = array<i64: 1, 128, 4>}, {pipeline_mode = #tpu.pipeline_mode<synchronous>, transform_indices = @transform_3, window_bounds = array<i64: 128, 4>}, {transform_indices = @transform_4, window_bounds = array<i64: 1, 4, 128>}, {transform_indices = @transform_5, window_bounds = array<i64: 1, 128, 128>}]} {
    %c0 = arith.constant 0 : index
    %c0_0 = arith.constant 0 : index
    %c0_1 = arith.constant 0 : index
    %0 = vector.load %arg1[%c0, %c0_0, %c0_1] : memref<1x4x128xf32, #tpu.memory_space<vmem>>, vector<1x4x128xf32>
    %1 = vector.shape_cast %0 : vector<1x4x128xf32> to vector<4x128xf32>
    %c0_2 = arith.constant 0 : index
    %c0_3 = arith.constant 0 : index
    %2 = vector.load %arg2[%c0_2, %c0_3] : memref<4x128xf32, #tpu.memory_space<vmem>>, vector<4x128xf32>
    %3 = vector.extract_strided_slice %2 {offsets = [0, 0], sizes = [1, 128], strides = [1, 1]} : vector<4x128xf32> to vector<1x128xf32>
    %4 = vector.extract_strided_slice %1 {offsets = [0, 0], sizes = [1, 128], strides = [1, 1]} : vector<4x128xf32> to vector<1x128xf32>
    %cst = arith.constant 1.000000e-01 : f32
    %5 = vector.broadcast %cst : f32 to vector<1x128xf32>
    %6 = arith.mulf %4, %5 : vector<1x128xf32>
    %7 = vector.extract_strided_slice %2 {offsets = [2, 0], sizes = [1, 128], strides = [1, 1]} : vector<4x128xf32> to vector<1x128xf32>
    %8 = arith.mulf %6, %7 : vector<1x128xf32>
    %9 = arith.addf %3, %8 : vector<1x128xf32>
    %10 = vector.extract_strided_slice %2 {offsets = [1, 0], sizes = [1, 128], strides = [1, 1]} : vector<4x128xf32> to vector<1x128xf32>
    %11 = vector.extract_strided_slice %1 {offsets = [1, 0], sizes = [1, 128], strides = [1, 1]} : vector<4x128xf32> to vector<1x128xf32>
    %cst_4 = arith.constant 1.000000e-01 : f32
    %12 = vector.broadcast %cst_4 : f32 to vector<1x128xf32>
    %13 = arith.mulf %11, %12 : vector<1x128xf32>
    %14 = vector.extract_strided_slice %2 {offsets = [3, 0], sizes = [1, 128], strides = [1, 1]} : vector<4x128xf32> to vector<1x128xf32>
    %15 = arith.mulf %13, %14 : vector<1x128xf32>
    %16 = arith.addf %10, %15 : vector<1x128xf32>
    %17 = vector.extract_strided_slice %2 {offsets = [2, 0], sizes = [1, 128], strides = [1, 1]} : vector<4x128xf32> to vector<1x128xf32>
    %18 = vector.extract_strided_slice %1 {offsets = [2, 0], sizes = [1, 128], strides = [1, 1]} : vector<4x128xf32> to vector<1x128xf32>
    %cst_5 = arith.constant 2.000000e-01 : f32
    %19 = vector.broadcast %cst_5 : f32 to vector<1x128xf32>
    %20 = arith.mulf %18, %19 : vector<1x128xf32>
    %21 = math.exp %20 : vector<1x128xf32>
    %22 = arith.mulf %17, %21 : vector<1x128xf32>
    %23 = vector.extract_strided_slice %2 {offsets = [3, 0], sizes = [1, 128], strides = [1, 1]} : vector<4x128xf32> to vector<1x128xf32>
    %24 = vector.extract_strided_slice %1 {offsets = [3, 0], sizes = [1, 128], strides = [1, 1]} : vector<4x128xf32> to vector<1x128xf32>
    %cst_6 = arith.constant 2.000000e-01 : f32
    %25 = vector.broadcast %cst_6 : f32 to vector<1x128xf32>
    %26 = arith.mulf %24, %25 : vector<1x128xf32>
    %27 = math.exp %26 : vector<1x128xf32>
    %28 = arith.mulf %23, %27 : vector<1x128xf32>
    %cst_7 = arith.constant 5.000000e-01 : f32
    %29 = vector.broadcast %cst_7 : f32 to vector<1x128xf32>
    %30 = arith.mulf %29, %22 : vector<1x128xf32>
    %31 = arith.subf %9, %30 : vector<1x128xf32>
    %cst_8 = arith.constant 5.000000e-01 : f32
    %32 = vector.broadcast %cst_8 : f32 to vector<1x128xf32>
    %33 = arith.mulf %32, %28 : vector<1x128xf32>
    %34 = arith.subf %16, %33 : vector<1x128xf32>
    %35 = arith.addf %31, %22 : vector<1x128xf32>
    %36 = arith.addf %34, %28 : vector<1x128xf32>
    %c0_9 = arith.constant 0 : index
    %c0_10 = arith.constant 0 : index
    %c0_11 = arith.constant 0 : index
    %37 = vector.load %arg5[%c0_9, %c0_10, %c0_11] : memref<1x4x128xf32, #tpu.memory_space<vmem>>, vector<1x1x128xf32>
    %38 = vector.shape_cast %37 : vector<1x1x128xf32> to vector<1x128xf32>
    %39 = vector.shape_cast %31 : vector<1x128xf32> to vector<1x1x128xf32>
    tpu.vector_store %arg5[%c0_9, %c0_10, %c0_11], %39 {strides = array<i32>} : memref<1x4x128xf32, #tpu.memory_space<vmem>>, vector<1x1x128xf32>,
    %c0_12 = arith.constant 0 : index
    %c1 = arith.constant 1 : index
    %c0_13 = arith.constant 0 : index
    %40 = vector.load %arg5[%c0_12, %c1, %c0_13] : memref<1x4x128xf32, #tpu.memory_space<vmem>>, vector<1x1x128xf32>
    %41 = vector.shape_cast %40 : vector<1x1x128xf32> to vector<1x128xf32>
    %42 = vector.shape_cast %34 : vector<1x128xf32> to vector<1x1x128xf32>
    tpu.vector_store %arg5[%c0_12, %c1, %c0_13], %42 {strides = array<i32>} : memref<1x4x128xf32, #tpu.memory_space<vmem>>, vector<1x1x128xf32>,
    %c0_14 = arith.constant 0 : index
    %c2 = arith.constant 2 : index
    %c0_15 = arith.constant 0 : index
    %43 = vector.load %arg5[%c0_14, %c2, %c0_15] : memref<1x4x128xf32, #tpu.memory_space<vmem>>, vector<1x1x128xf32>
    %44 = vector.shape_cast %43 : vector<1x1x128xf32> to vector<1x128xf32>
    %45 = vector.shape_cast %35 : vector<1x128xf32> to vector<1x1x128xf32>
    tpu.vector_store %arg5[%c0_14, %c2, %c0_15], %45 {strides = array<i32>} : memref<1x4x128xf32, #tpu.memory_space<vmem>>, vector<1x1x128xf32>,
    %c0_16 = arith.constant 0 : index
    %c3 = arith.constant 3 : index
    %c0_17 = arith.constant 0 : index
    %46 = vector.load %arg5[%c0_16, %c3, %c0_17] : memref<1x4x128xf32, #tpu.memory_space<vmem>>, vector<1x1x128xf32>
    %47 = vector.shape_cast %46 : vector<1x1x128xf32> to vector<1x128xf32>
    %48 = vector.shape_cast %36 : vector<1x128xf32> to vector<1x1x128xf32>
    tpu.vector_store %arg5[%c0_16, %c3, %c0_17], %48 {strides = array<i32>} : memref<1x4x128xf32, #tpu.memory_space<vmem>>, vector<1x1x128xf32>,
    %49 = arith.subf %35, %31 : vector<1x128xf32>
    %50 = arith.subf %36, %34 : vector<1x128xf32>
    %51 = arith.mulf %49, %50 : vector<1x128xf32>
    %c0_18 = arith.constant 0 : index
    %c0_19 = arith.constant 0 : index
    %c0_20 = arith.constant 0 : index
    %52 = vector.load %arg3[%c0_18, %c0_19, %c0_20] : memref<1x128x4xf32, #tpu.memory_space<vmem>>, vector<1x32x4xf32>
    %53 = vector.shape_cast %52 : vector<1x32x4xf32> to vector<32x4xf32>
    %c0_21 = arith.constant 0 : index
    %c0_22 = arith.constant 0 : index
    %54 = vector.load %arg4[%c0_21, %c0_22] : memref<128x4xf32, #tpu.memory_space<vmem>>, vector<32x4xf32>
    %55 = vector.extract_strided_slice %54 {offsets = [0, 0], sizes = [32, 1], strides = [1, 1]} : vector<32x4xf32> to vector<32x1xf32>
    %56 = vector.extract_strided_slice %53 {offsets = [0, 0], sizes = [32, 1], strides = [1, 1]} : vector<32x4xf32> to vector<32x1xf32>
    %cst_23 = arith.constant 1.000000e-01 : f32
    %57 = vector.broadcast %cst_23 : f32 to vector<32x1xf32>
    %58 = arith.mulf %56, %57 : vector<32x1xf32>
    %59 = vector.extract_strided_slice %54 {offsets = [0, 2], sizes = [32, 1], strides = [1, 1]} : vector<32x4xf32> to vector<32x1xf32>
    %60 = arith.mulf %58, %59 : vector<32x1xf32>
    %61 = arith.addf %55, %60 : vector<32x1xf32>
    %62 = vector.extract_strided_slice %54 {offsets = [0, 1], sizes = [32, 1], strides = [1, 1]} : vector<32x4xf32> to vector<32x1xf32>
    %63 = vector.extract_strided_slice %53 {offsets = [0, 1], sizes = [32, 1], strides = [1, 1]} : vector<32x4xf32> to vector<32x1xf32>
    %cst_24 = arith.constant 1.000000e-01 : f32
    %64 = vector.broadcast %cst_24 : f32 to vector<32x1xf32>
    %65 = arith.mulf %63, %64 : vector<32x1xf32>
    %66 = vector.extract_strided_slice %54 {offsets = [0, 3], sizes = [32, 1], strides = [1, 1]} : vector<32x4xf32> to vector<32x1xf32>
    %67 = arith.mulf %65, %66 : vector<32x1xf32>
    %68 = arith.addf %62, %67 : vector<32x1xf32>
    %69 = vector.extract_strided_slice %54 {offsets = [0, 2], sizes = [32, 1], strides = [1, 1]} : vector<32x4xf32> to vector<32x1xf32>
    %70 = vector.extract_strided_slice %53 {offsets = [0, 2], sizes = [32, 1], strides = [1, 1]} : vector<32x4xf32> to vector<32x1xf32>
    %cst_25 = arith.constant 2.000000e-01 : f32
    %71 = vector.broadcast %cst_25 : f32 to vector<32x1xf32>
    %72 = arith.mulf %70, %71 : vector<32x1xf32>
    %73 = math.exp %72 : vector<32x1xf32>
    %74 = arith.mulf %69, %73 : vector<32x1xf32>
    %75 = vector.extract_strided_slice %54 {offsets = [0, 3], sizes = [32, 1], strides = [1, 1]} : vector<32x4xf32> to vector<32x1xf32>
    %76 = vector.extract_strided_slice %53 {offsets = [0, 3], sizes = [32, 1], strides = [1, 1]} : vector<32x4xf32> to vector<32x1xf32>
    %cst_26 = arith.constant 2.000000e-01 : f32
    %77 = vector.broadcast %cst_26 : f32 to vector<32x1xf32>
    %78 = arith.mulf %76, %77 : vector<32x1xf32>
    %79 = math.exp %78 : vector<32x1xf32>
    %80 = arith.mulf %75, %79 : vector<32x1xf32>
    %cst_27 = arith.constant 5.000000e-01 : f32
    %81 = vector.broadcast %cst_27 : f32 to vector<32x1xf32>
    %82 = arith.mulf %81, %74 : vector<32x1xf32>
    %83 = arith.subf %61, %82 : vector<32x1xf32>
    %cst_28 = arith.constant 5.000000e-01 : f32
    %84 = vector.broadcast %cst_28 : f32 to vector<32x1xf32>
    %85 = arith.mulf %84, %80 : vector<32x1xf32>
    %86 = arith.subf %68, %85 : vector<32x1xf32>
    %87 = arith.addf %83, %74 : vector<32x1xf32>
    %88 = arith.addf %86, %80 : vector<32x1xf32>
    %89 = arith.subf %87, %83 : vector<32x1xf32>
    %90 = arith.subf %88, %86 : vector<32x1xf32>
    %91 = arith.mulf %89, %90 : vector<32x1xf32>
    %92 = vector.broadcast %83 : vector<32x1xf32> to vector<32x128xf32>
    %93 = vector.broadcast %31 : vector<1x128xf32> to vector<32x128xf32>
    %94 = arith.maximumf %92, %93 : vector<32x128xf32>
    %95 = vector.broadcast %86 : vector<32x1xf32> to vector<32x128xf32>
    %96 = vector.broadcast %34 : vector<1x128xf32> to vector<32x128xf32>
    %97 = arith.maximumf %95, %96 : vector<32x128xf32>
    %98 = vector.broadcast %87 : vector<32x1xf32> to vector<32x128xf32>
    %99 = vector.broadcast %35 : vector<1x128xf32> to vector<32x128xf32>
    %100 = arith.minimumf %98, %99 : vector<32x128xf32>
    %101 = vector.broadcast %88 : vector<32x1xf32> to vector<32x128xf32>
    %102 = vector.broadcast %36 : vector<1x128xf32> to vector<32x128xf32>
    %103 = arith.minimumf %101, %102 : vector<32x128xf32>
    %104 = arith.subf %100, %94 : vector<32x128xf32>
    %cst_29 = arith.constant 0.000000e+00 : f32
    %105 = vector.broadcast %cst_29 : f32 to vector<32x128xf32>
    %106 = arith.maximumf %104, %105 : vector<32x128xf32>
    %107 = arith.subf %103, %97 : vector<32x128xf32>
    %cst_30 = arith.constant 0.000000e+00 : f32
    %108 = vector.broadcast %cst_30 : f32 to vector<32x128xf32>
    %109 = arith.maximumf %107, %108 : vector<32x128xf32>
    %110 = arith.mulf %106, %109 : vector<32x128xf32>
    %111 = vector.broadcast %91 : vector<32x1xf32> to vector<32x128xf32>
    %112 = vector.broadcast %51 : vector<1x128xf32> to vector<32x128xf32>
    %113 = arith.addf %111, %112 : vector<32x128xf32>
    %114 = arith.subf %113, %110 : vector<32x128xf32>
    %cst_31 = arith.constant 9.99999996E-13 : f32
    %115 = vector.broadcast %cst_31 : f32 to vector<32x128xf32>
    %116 = arith.maximumf %114, %115 : vector<32x128xf32>
    %117 = tpu.reciprocal %116 {approx = true} : vector<32x128xf32> -> vector<32x128xf32>
    %118 = arith.mulf %110, %117 : vector<32x128xf32>
    %c0_32 = arith.constant 0 : index
    %c0_33 = arith.constant 0 : index
    %c0_34 = arith.constant 0 : index
    %119 = vector.load %arg6[%c0_32, %c0_33, %c0_34] : memref<1x128x128xf32, #tpu.memory_space<vmem>>, vector<1x32x128xf32>
    %120 = vector.shape_cast %119 : vector<1x32x128xf32> to vector<32x128xf32>
    %121 = vector.shape_cast %118 : vector<32x128xf32> to vector<1x32x128xf32>
    tpu.vector_store %arg6[%c0_32, %c0_33, %c0_34], %121 {strides = array<i32>} : memref<1x128x128xf32, #tpu.memory_space<vmem>>, vector<1x32x128xf32>,
    %c0_35 = arith.constant 0 : index
    %c32 = arith.constant 32 : index
    %c0_36 = arith.constant 0 : index
    %122 = vector.load %arg3[%c0_35, %c32, %c0_36] : memref<1x128x4xf32, #tpu.memory_space<vmem>>, vector<1x32x4xf32>
    %123 = vector.shape_cast %122 : vector<1x32x4xf32> to vector<32x4xf32>
    %c32_37 = arith.constant 32 : index
    %c0_38 = arith.constant 0 : index
    %124 = vector.load %arg4[%c32_37, %c0_38] : memref<128x4xf32, #tpu.memory_space<vmem>>, vector<32x4xf32>
    %125 = vector.extract_strided_slice %124 {offsets = [0, 0], sizes = [32, 1], strides = [1, 1]} : vector<32x4xf32> to vector<32x1xf32>
    %126 = vector.extract_strided_slice %123 {offsets = [0, 0], sizes = [32, 1], strides = [1, 1]} : vector<32x4xf32> to vector<32x1xf32>
    %cst_39 = arith.constant 1.000000e-01 : f32
    %127 = vector.broadcast %cst_39 : f32 to vector<32x1xf32>
    %128 = arith.mulf %126, %127 : vector<32x1xf32>
    %129 = vector.extract_strided_slice %124 {offsets = [0, 2], sizes = [32, 1], strides = [1, 1]} : vector<32x4xf32> to vector<32x1xf32>
    %130 = arith.mulf %128, %129 : vector<32x1xf32>
    %131 = arith.addf %125, %130 : vector<32x1xf32>
    %132 = vector.extract_strided_slice %124 {offsets = [0, 1], sizes = [32, 1], strides = [1, 1]} : vector<32x4xf32> to vector<32x1xf32>
    %133 = vector.extract_strided_slice %123 {offsets = [0, 1], sizes = [32, 1], strides = [1, 1]} : vector<32x4xf32> to vector<32x1xf32>
    %cst_40 = arith.constant 1.000000e-01 : f32
    %134 = vector.broadcast %cst_40 : f32 to vector<32x1xf32>
    %135 = arith.mulf %133, %134 : vector<32x1xf32>
    %136 = vector.extract_strided_slice %124 {offsets = [0, 3], sizes = [32, 1], strides = [1, 1]} : vector<32x4xf32> to vector<32x1xf32>
    %137 = arith.mulf %135, %136 : vector<32x1xf32>
    %138 = arith.addf %132, %137 : vector<32x1xf32>
    %139 = vector.extract_strided_slice %124 {offsets = [0, 2], sizes = [32, 1], strides = [1, 1]} : vector<32x4xf32> to vector<32x1xf32>
    %140 = vector.extract_strided_slice %123 {offsets = [0, 2], sizes = [32, 1], strides = [1, 1]} : vector<32x4xf32> to vector<32x1xf32>
    %cst_41 = arith.constant 2.000000e-01 : f32
    %141 = vector.broadcast %cst_41 : f32 to vector<32x1xf32>
    %142 = arith.mulf %140, %141 : vector<32x1xf32>
    %143 = math.exp %142 : vector<32x1xf32>
    %144 = arith.mulf %139, %143 : vector<32x1xf32>
    %145 = vector.extract_strided_slice %124 {offsets = [0, 3], sizes = [32, 1], strides = [1, 1]} : vector<32x4xf32> to vector<32x1xf32>
    %146 = vector.extract_strided_slice %123 {offsets = [0, 3], sizes = [32, 1], strides = [1, 1]} : vector<32x4xf32> to vector<32x1xf32>
    %cst_42 = arith.constant 2.000000e-01 : f32
    %147 = vector.broadcast %cst_42 : f32 to vector<32x1xf32>
    %148 = arith.mulf %146, %147 : vector<32x1xf32>
    %149 = math.exp %148 : vector<32x1xf32>
    %150 = arith.mulf %145, %149 : vector<32x1xf32>
    %cst_43 = arith.constant 5.000000e-01 : f32
    %151 = vector.broadcast %cst_43 : f32 to vector<32x1xf32>
    %152 = arith.mulf %151, %144 : vector<32x1xf32>
    %153 = arith.subf %131, %152 : vector<32x1xf32>
    %cst_44 = arith.constant 5.000000e-01 : f32
    %154 = vector.broadcast %cst_44 : f32 to vector<32x1xf32>
    %155 = arith.mulf %154, %150 : vector<32x1xf32>
    %156 = arith.subf %138, %155 : vector<32x1xf32>
    %157 = arith.addf %153, %144 : vector<32x1xf32>
    %158 = arith.addf %156, %150 : vector<32x1xf32>
    %159 = arith.subf %157, %153 : vector<32x1xf32>
    %160 = arith.subf %158, %156 : vector<32x1xf32>
    %161 = arith.mulf %159, %160 : vector<32x1xf32>
    %162 = vector.broadcast %153 : vector<32x1xf32> to vector<32x128xf32>
    %163 = vector.broadcast %31 : vector<1x128xf32> to vector<32x128xf32>
    %164 = arith.maximumf %162, %163 : vector<32x128xf32>
    %165 = vector.broadcast %156 : vector<32x1xf32> to vector<32x128xf32>
    %166 = vector.broadcast %34 : vector<1x128xf32> to vector<32x128xf32>
    %167 = arith.maximumf %165, %166 : vector<32x128xf32>
    %168 = vector.broadcast %157 : vector<32x1xf32> to vector<32x128xf32>
    %169 = vector.broadcast %35 : vector<1x128xf32> to vector<32x128xf32>
    %170 = arith.minimumf %168, %169 : vector<32x128xf32>
    %171 = vector.broadcast %158 : vector<32x1xf32> to vector<32x128xf32>
    %172 = vector.broadcast %36 : vector<1x128xf32> to vector<32x128xf32>
    %173 = arith.minimumf %171, %172 : vector<32x128xf32>
    %174 = arith.subf %170, %164 : vector<32x128xf32>
    %cst_45 = arith.constant 0.000000e+00 : f32
    %175 = vector.broadcast %cst_45 : f32 to vector<32x128xf32>
    %176 = arith.maximumf %174, %175 : vector<32x128xf32>
    %177 = arith.subf %173, %167 : vector<32x128xf32>
    %cst_46 = arith.constant 0.000000e+00 : f32
    %178 = vector.broadcast %cst_46 : f32 to vector<32x128xf32>
    %179 = arith.maximumf %177, %178 : vector<32x128xf32>
    %180 = arith.mulf %176, %179 : vector<32x128xf32>
    %181 = vector.broadcast %161 : vector<32x1xf32> to vector<32x128xf32>
    %182 = vector.broadcast %51 : vector<1x128xf32> to vector<32x128xf32>
    %183 = arith.addf %181, %182 : vector<32x128xf32>
    %184 = arith.subf %183, %180 : vector<32x128xf32>
    %cst_47 = arith.constant 9.99999996E-13 : f32
    %185 = vector.broadcast %cst_47 : f32 to vector<32x128xf32>
    %186 = arith.maximumf %184, %185 : vector<32x128xf32>
    %187 = tpu.reciprocal %186 {approx = true} : vector<32x128xf32> -> vector<32x128xf32>
    %188 = arith.mulf %180, %187 : vector<32x128xf32>
    %c0_48 = arith.constant 0 : index
    %c32_49 = arith.constant 32 : index
    %c0_50 = arith.constant 0 : index
    %189 = vector.load %arg6[%c0_48, %c32_49, %c0_50] : memref<1x128x128xf32, #tpu.memory_space<vmem>>, vector<1x32x128xf32>
    %190 = vector.shape_cast %189 : vector<1x32x128xf32> to vector<32x128xf32>
    %191 = vector.shape_cast %188 : vector<32x128xf32> to vector<1x32x128xf32>
    tpu.vector_store %arg6[%c0_48, %c32_49, %c0_50], %191 {strides = array<i32>} : memref<1x128x128xf32, #tpu.memory_space<vmem>>, vector<1x32x128xf32>,
    %c0_51 = arith.constant 0 : index
    %c64 = arith.constant 64 : index
    %c0_52 = arith.constant 0 : index
    %192 = vector.load %arg3[%c0_51, %c64, %c0_52] : memref<1x128x4xf32, #tpu.memory_space<vmem>>, vector<1x32x4xf32>
    %193 = vector.shape_cast %192 : vector<1x32x4xf32> to vector<32x4xf32>
    %c64_53 = arith.constant 64 : index
    %c0_54 = arith.constant 0 : index
    %194 = vector.load %arg4[%c64_53, %c0_54] : memref<128x4xf32, #tpu.memory_space<vmem>>, vector<32x4xf32>
    %195 = vector.extract_strided_slice %194 {offsets = [0, 0], sizes = [32, 1], strides = [1, 1]} : vector<32x4xf32> to vector<32x1xf32>
    %196 = vector.extract_strided_slice %193 {offsets = [0, 0], sizes = [32, 1], strides = [1, 1]} : vector<32x4xf32> to vector<32x1xf32>
    %cst_55 = arith.constant 1.000000e-01 : f32
    %197 = vector.broadcast %cst_55 : f32 to vector<32x1xf32>
    %198 = arith.mulf %196, %197 : vector<32x1xf32>
    %199 = vector.extract_strided_slice %194 {offsets = [0, 2], sizes = [32, 1], strides = [1, 1]} : vector<32x4xf32> to vector<32x1xf32>
    %200 = arith.mulf %198, %199 : vector<32x1xf32>
    %201 = arith.addf %195, %200 : vector<32x1xf32>
    %202 = vector.extract_strided_slice %194 {offsets = [0, 1], sizes = [32, 1], strides = [1, 1]} : vector<32x4xf32> to vector<32x1xf32>
    %203 = vector.extract_strided_slice %193 {offsets = [0, 1], sizes = [32, 1], strides = [1, 1]} : vector<32x4xf32> to vector<32x1xf32>
    %cst_56 = arith.constant 1.000000e-01 : f32
    %204 = vector.broadcast %cst_56 : f32 to vector<32x1xf32>
    %205 = arith.mulf %203, %204 : vector<32x1xf32>
    %206 = vector.extract_strided_slice %194 {offsets = [0, 3], sizes = [32, 1], strides = [1, 1]} : vector<32x4xf32> to vector<32x1xf32>
    %207 = arith.mulf %205, %206 : vector<32x1xf32>
    %208 = arith.addf %202, %207 : vector<32x1xf32>
    %209 = vector.extract_strided_slice %194 {offsets = [0, 2], sizes = [32, 1], strides = [1, 1]} : vector<32x4xf32> to vector<32x1xf32>
    %210 = vector.extract_strided_slice %193 {offsets = [0, 2], sizes = [32, 1], strides = [1, 1]} : vector<32x4xf32> to vector<32x1xf32>
    %cst_57 = arith.constant 2.000000e-01 : f32
    %211 = vector.broadcast %cst_57 : f32 to vector<32x1xf32>
    %212 = arith.mulf %210, %211 : vector<32x1xf32>
    %213 = math.exp %212 : vector<32x1xf32>
    %214 = arith.mulf %209, %213 : vector<32x1xf32>
    %215 = vector.extract_strided_slice %194 {offsets = [0, 3], sizes = [32, 1], strides = [1, 1]} : vector<32x4xf32> to vector<32x1xf32>
    %216 = vector.extract_strided_slice %193 {offsets = [0, 3], sizes = [32, 1], strides = [1, 1]} : vector<32x4xf32> to vector<32x1xf32>
    %cst_58 = arith.constant 2.000000e-01 : f32
    %217 = vector.broadcast %cst_58 : f32 to vector<32x1xf32>
    %218 = arith.mulf %216, %217 : vector<32x1xf32>
    %219 = math.exp %218 : vector<32x1xf32>
    %220 = arith.mulf %215, %219 : vector<32x1xf32>
    %cst_59 = arith.constant 5.000000e-01 : f32
    %221 = vector.broadcast %cst_59 : f32 to vector<32x1xf32>
    %222 = arith.mulf %221, %214 : vector<32x1xf32>
    %223 = arith.subf %201, %222 : vector<32x1xf32>
    %cst_60 = arith.constant 5.000000e-01 : f32
    %224 = vector.broadcast %cst_60 : f32 to vector<32x1xf32>
    %225 = arith.mulf %224, %220 : vector<32x1xf32>
    %226 = arith.subf %208, %225 : vector<32x1xf32>
    %227 = arith.addf %223, %214 : vector<32x1xf32>
    %228 = arith.addf %226, %220 : vector<32x1xf32>
    %229 = arith.subf %227, %223 : vector<32x1xf32>
    %230 = arith.subf %228, %226 : vector<32x1xf32>
    %231 = arith.mulf %229, %230 : vector<32x1xf32>
    %232 = vector.broadcast %223 : vector<32x1xf32> to vector<32x128xf32>
    %233 = vector.broadcast %31 : vector<1x128xf32> to vector<32x128xf32>
    %234 = arith.maximumf %232, %233 : vector<32x128xf32>
    %235 = vector.broadcast %226 : vector<32x1xf32> to vector<32x128xf32>
    %236 = vector.broadcast %34 : vector<1x128xf32> to vector<32x128xf32>
    %237 = arith.maximumf %235, %236 : vector<32x128xf32>
    %238 = vector.broadcast %227 : vector<32x1xf32> to vector<32x128xf32>
    %239 = vector.broadcast %35 : vector<1x128xf32> to vector<32x128xf32>
    %240 = arith.minimumf %238, %239 : vector<32x128xf32>
    %241 = vector.broadcast %228 : vector<32x1xf32> to vector<32x128xf32>
    %242 = vector.broadcast %36 : vector<1x128xf32> to vector<32x128xf32>
    %243 = arith.minimumf %241, %242 : vector<32x128xf32>
    %244 = arith.subf %240, %234 : vector<32x128xf32>
    %cst_61 = arith.constant 0.000000e+00 : f32
    %245 = vector.broadcast %cst_61 : f32 to vector<32x128xf32>
    %246 = arith.maximumf %244, %245 : vector<32x128xf32>
    %247 = arith.subf %243, %237 : vector<32x128xf32>
    %cst_62 = arith.constant 0.000000e+00 : f32
    %248 = vector.broadcast %cst_62 : f32 to vector<32x128xf32>
    %249 = arith.maximumf %247, %248 : vector<32x128xf32>
    %250 = arith.mulf %246, %249 : vector<32x128xf32>
    %251 = vector.broadcast %231 : vector<32x1xf32> to vector<32x128xf32>
    %252 = vector.broadcast %51 : vector<1x128xf32> to vector<32x128xf32>
    %253 = arith.addf %251, %252 : vector<32x128xf32>
    %254 = arith.subf %253, %250 : vector<32x128xf32>
    %cst_63 = arith.constant 9.99999996E-13 : f32
    %255 = vector.broadcast %cst_63 : f32 to vector<32x128xf32>
    %256 = arith.maximumf %254, %255 : vector<32x128xf32>
    %257 = tpu.reciprocal %256 {approx = true} : vector<32x128xf32> -> vector<32x128xf32>
    %258 = arith.mulf %250, %257 : vector<32x128xf32>
    %c0_64 = arith.constant 0 : index
    %c64_65 = arith.constant 64 : index
    %c0_66 = arith.constant 0 : index
    %259 = vector.load %arg6[%c0_64, %c64_65, %c0_66] : memref<1x128x128xf32, #tpu.memory_space<vmem>>, vector<1x32x128xf32>
    %260 = vector.shape_cast %259 : vector<1x32x128xf32> to vector<32x128xf32>
    %261 = vector.shape_cast %258 : vector<32x128xf32> to vector<1x32x128xf32>
    tpu.vector_store %arg6[%c0_64, %c64_65, %c0_66], %261 {strides = array<i32>} : memref<1x128x128xf32, #tpu.memory_space<vmem>>, vector<1x32x128xf32>,
    %c0_67 = arith.constant 0 : index
    %c96 = arith.constant 96 : index
    %c0_68 = arith.constant 0 : index
    %262 = vector.load %arg3[%c0_67, %c96, %c0_68] : memref<1x128x4xf32, #tpu.memory_space<vmem>>, vector<1x32x4xf32>
    %263 = vector.shape_cast %262 : vector<1x32x4xf32> to vector<32x4xf32>
    %c96_69 = arith.constant 96 : index
    %c0_70 = arith.constant 0 : index
    %264 = vector.load %arg4[%c96_69, %c0_70] : memref<128x4xf32, #tpu.memory_space<vmem>>, vector<32x4xf32>
    %265 = vector.extract_strided_slice %264 {offsets = [0, 0], sizes = [32, 1], strides = [1, 1]} : vector<32x4xf32> to vector<32x1xf32>
    %266 = vector.extract_strided_slice %263 {offsets = [0, 0], sizes = [32, 1], strides = [1, 1]} : vector<32x4xf32> to vector<32x1xf32>
    %cst_71 = arith.constant 1.000000e-01 : f32
    %267 = vector.broadcast %cst_71 : f32 to vector<32x1xf32>
    %268 = arith.mulf %266, %267 : vector<32x1xf32>
    %269 = vector.extract_strided_slice %264 {offsets = [0, 2], sizes = [32, 1], strides = [1, 1]} : vector<32x4xf32> to vector<32x1xf32>
    %270 = arith.mulf %268, %269 : vector<32x1xf32>
    %271 = arith.addf %265, %270 : vector<32x1xf32>
    %272 = vector.extract_strided_slice %264 {offsets = [0, 1], sizes = [32, 1], strides = [1, 1]} : vector<32x4xf32> to vector<32x1xf32>
    %273 = vector.extract_strided_slice %263 {offsets = [0, 1], sizes = [32, 1], strides = [1, 1]} : vector<32x4xf32> to vector<32x1xf32>
    %cst_72 = arith.constant 1.000000e-01 : f32
    %274 = vector.broadcast %cst_72 : f32 to vector<32x1xf32>
    %275 = arith.mulf %273, %274 : vector<32x1xf32>
    %276 = vector.extract_strided_slice %264 {offsets = [0, 3], sizes = [32, 1], strides = [1, 1]} : vector<32x4xf32> to vector<32x1xf32>
    %277 = arith.mulf %275, %276 : vector<32x1xf32>
    %278 = arith.addf %272, %277 : vector<32x1xf32>
    %279 = vector.extract_strided_slice %264 {offsets = [0, 2], sizes = [32, 1], strides = [1, 1]} : vector<32x4xf32> to vector<32x1xf32>
    %280 = vector.extract_strided_slice %263 {offsets = [0, 2], sizes = [32, 1], strides = [1, 1]} : vector<32x4xf32> to vector<32x1xf32>
    %cst_73 = arith.constant 2.000000e-01 : f32
    %281 = vector.broadcast %cst_73 : f32 to vector<32x1xf32>
    %282 = arith.mulf %280, %281 : vector<32x1xf32>
    %283 = math.exp %282 : vector<32x1xf32>
    %284 = arith.mulf %279, %283 : vector<32x1xf32>
    %285 = vector.extract_strided_slice %264 {offsets = [0, 3], sizes = [32, 1], strides = [1, 1]} : vector<32x4xf32> to vector<32x1xf32>
    %286 = vector.extract_strided_slice %263 {offsets = [0, 3], sizes = [32, 1], strides = [1, 1]} : vector<32x4xf32> to vector<32x1xf32>
    %cst_74 = arith.constant 2.000000e-01 : f32
    %287 = vector.broadcast %cst_74 : f32 to vector<32x1xf32>
    %288 = arith.mulf %286, %287 : vector<32x1xf32>
    %289 = math.exp %288 : vector<32x1xf32>
    %290 = arith.mulf %285, %289 : vector<32x1xf32>
    %cst_75 = arith.constant 5.000000e-01 : f32
    %291 = vector.broadcast %cst_75 : f32 to vector<32x1xf32>
    %292 = arith.mulf %291, %284 : vector<32x1xf32>
    %293 = arith.subf %271, %292 : vector<32x1xf32>
    %cst_76 = arith.constant 5.000000e-01 : f32
    %294 = vector.broadcast %cst_76 : f32 to vector<32x1xf32>
    %295 = arith.mulf %294, %290 : vector<32x1xf32>
    %296 = arith.subf %278, %295 : vector<32x1xf32>
    %297 = arith.addf %293, %284 : vector<32x1xf32>
    %298 = arith.addf %296, %290 : vector<32x1xf32>
    %299 = arith.subf %297, %293 : vector<32x1xf32>
    %300 = arith.subf %298, %296 : vector<32x1xf32>
    %301 = arith.mulf %299, %300 : vector<32x1xf32>
    %302 = vector.broadcast %293 : vector<32x1xf32> to vector<32x128xf32>
    %303 = vector.broadcast %31 : vector<1x128xf32> to vector<32x128xf32>
    %304 = arith.maximumf %302, %303 : vector<32x128xf32>
    %305 = vector.broadcast %296 : vector<32x1xf32> to vector<32x128xf32>
    %306 = vector.broadcast %34 : vector<1x128xf32> to vector<32x128xf32>
    %307 = arith.maximumf %305, %306 : vector<32x128xf32>
    %308 = vector.broadcast %297 : vector<32x1xf32> to vector<32x128xf32>
    %309 = vector.broadcast %35 : vector<1x128xf32> to vector<32x128xf32>
    %310 = arith.minimumf %308, %309 : vector<32x128xf32>
    %311 = vector.broadcast %298 : vector<32x1xf32> to vector<32x128xf32>
    %312 = vector.broadcast %36 : vector<1x128xf32> to vector<32x128xf32>
    %313 = arith.minimumf %311, %312 : vector<32x128xf32>
    %314 = arith.subf %310, %304 : vector<32x128xf32>
    %cst_77 = arith.constant 0.000000e+00 : f32
    %315 = vector.broadcast %cst_77 : f32 to vector<32x128xf32>
    %316 = arith.maximumf %314, %315 : vector<32x128xf32>
    %317 = arith.subf %313, %307 : vector<32x128xf32>
    %cst_78 = arith.constant 0.000000e+00 : f32
    %318 = vector.broadcast %cst_78 : f32 to vector<32x128xf32>
    %319 = arith.maximumf %317, %318 : vector<32x128xf32>
    %320 = arith.mulf %316, %319 : vector<32x128xf32>
    %321 = vector.broadcast %301 : vector<32x1xf32> to vector<32x128xf32>
    %322 = vector.broadcast %51 : vector<1x128xf32> to vector<32x128xf32>
    %323 = arith.addf %321, %322 : vector<32x128xf32>
    %324 = arith.subf %323, %320 : vector<32x128xf32>
    %cst_79 = arith.constant 9.99999996E-13 : f32
    %325 = vector.broadcast %cst_79 : f32 to vector<32x128xf32>
    %326 = arith.maximumf %324, %325 : vector<32x128xf32>
    %327 = tpu.reciprocal %326 {approx = true} : vector<32x128xf32> -> vector<32x128xf32>
    %328 = arith.mulf %320, %327 : vector<32x128xf32>
    %c0_80 = arith.constant 0 : index
    %c96_81 = arith.constant 96 : index
    %c0_82 = arith.constant 0 : index
    %329 = vector.load %arg6[%c0_80, %c96_81, %c0_82] : memref<1x128x128xf32, #tpu.memory_space<vmem>>, vector<1x32x128xf32>
    %330 = vector.shape_cast %329 : vector<1x32x128xf32> to vector<32x128xf32>
    %331 = vector.shape_cast %328 : vector<32x128xf32> to vector<1x32x128xf32>
    tpu.vector_store %arg6[%c0_80, %c96_81, %c0_82], %331 {strides = array<i32>} : memref<1x128x128xf32, #tpu.memory_space<vmem>>, vector<1x32x128xf32>,
    return
  }
  func.func @transform_0(%arg0: i32) -> (i32, i32, i32) {
    %c0_i32 = arith.constant 0 : i32
    %c0_i32_0 = arith.constant 0 : i32
    %c0_i32_1 = arith.constant 0 : i32
    return %arg0, %c0_i32, %c0_i32_0 : i32, i32, i32
  }
  func.func @transform_1(%arg0: i32) -> (i32, i32) {
    %c0_i32 = arith.constant 0 : i32
    %c0_i32_0 = arith.constant 0 : i32
    %c0_i32_1 = arith.constant 0 : i32
    return %c0_i32, %c0_i32_0 : i32, i32
  }
  func.func @transform_2(%arg0: i32) -> (i32, i32, i32) {
    %c0_i32 = arith.constant 0 : i32
    %c0_i32_0 = arith.constant 0 : i32
    %c0_i32_1 = arith.constant 0 : i32
    return %arg0, %c0_i32, %c0_i32_0 : i32, i32, i32
  }
  func.func @transform_3(%arg0: i32) -> (i32, i32) {
    %c0_i32 = arith.constant 0 : i32
    %c0_i32_0 = arith.constant 0 : i32
    %c0_i32_1 = arith.constant 0 : i32
    return %c0_i32, %c0_i32_0 : i32, i32
  }
  func.func @transform_4(%arg0: i32) -> (i32, i32, i32) {
    %c0_i32 = arith.constant 0 : i32
    %c0_i32_0 = arith.constant 0 : i32
    %c0_i32_1 = arith.constant 0 : i32
    return %arg0, %c0_i32, %c0_i32_0 : i32, i32, i32
  }
  func.func @transform_5(%arg0: i32) -> (i32, i32, i32) {
    %c0_i32 = arith.constant 0 : i32
    %c0_i32_0 = arith.constant 0 : i32
    %c0_i32_1 = arith.constant 0 : i32
    return %arg0, %c0_i32, %c0_i32_0 : i32, i32, i32
  }
}

</mosaic_0001>

<llo_original>
// kernel: tpu_custom_call.1
$region0: #{tpu_custom_call.1}
  #allocation0 [shape = 'u32[]', space=smem, size = 0x4, offset = 0x4, fixed_abs, tag = 'smem constant byte address 0x4 - core index']
  #allocation1 [shape = 'u32[144,128]{1,0:T(1,128)}', space=vmem, size = 0x12000, scoped, tag = 'internal scratch']
  %s0 = inlined_call_operand.vmem [shape: f32[2,4,128], index: 0, kind: input, shape index: {}]
  %s1 = inlined_call_operand.vmem [shape: f32[4,128], index: 1, kind: input, shape index: {}]
  %s2 = inlined_call_operand.vmem [shape: f32[2,128,4], index: 2, kind: input, shape index: {}]
  %s3 = inlined_call_operand.vmem [shape: f32[128,4], index: 3, kind: input, shape index: {}]
  %s4 = inlined_call_operand.hbm [shape: f32[2,4,128], index: 4, kind: output, shape index: {0}]
  %s5 = inlined_call_operand.hbm [shape: f32[2,128,128], index: 5, kind: output, shape index: {1}]
  %6 = xla_tuple %s4, %s5
  %s7 = sld [smem:[#allocation0]]
  $region57: #{tpu_custom_call.1} parent=0
    _
  %s9 = ssub.s32 1, %s7
  %s10 = scalar_select 0, %s9, %s7
  $region1: #{tpu_custom_call.1} parent=0
    #allocation2 [shape = 'u8[4096]{0}', space=vmem, size = 0x1000, scoped, tag = 'output window, operand 0']
    #allocation3 [shape = 's32[2]{0}', space=sflag, size = 0x8, scoped, tag = 'scoped memory for tpu_custom_call.1']
    #allocation4 [shape = 'u8[131072]{0}', space=vmem, size = 0x20000, scoped, tag = 'output window, operand 1']
    #allocation5 [shape = 's32[2]{0}', space=sflag, size = 0x8, scoped, tag = 'scoped memory for tpu_custom_call.1']
    %11 = vsyncpa [#allocation3], 0
    %s12 = scalar_lea.sflag [#allocation3], 1
    %13 = vsyncpa %s12, 0
    %14 = vsyncpa [#allocation5], 0
    %s15 = scalar_lea.sflag [#allocation5], 1
    %16 = vsyncpa %s15, 0
    loop: start=0, step=1, limit=4
    $region2: #{tpu_custom_call.1} parent=1 // loop_pre_header
      _
    $region3: #{tpu_custom_call.1} parent=1 // loop_header
      %s18 = sphi 0, %s22
      %p19 = scmp.ge.s32.totalorder %s18, 4
      %s28 = sphi 0, %s30
      %s31 = sphi 0, %s28
      %s32 = sphi 0, %s31
      %s48 = sphi 0, %s32
      %s52 = sphi 0, %s52
      %s54 = sphi 0, %s52
      %s55 = sphi 0, %s54
      %s69 = sphi 0, %s55
      %s75 = sphi 0, %s77
      %s78 = sphi 0, %s75
      %s79 = sphi 0, %s78
      %s95 = sphi 0, %s79
      %s99 = sphi 0, %s99
      %s101 = sphi 0, %s99
      %s102 = sphi 0, %s101
      %s116 = sphi 0, %s102
      %s122 = sphi 0, %s124
      %s125 = sphi 0, %s122
      %s126 = sphi 0, %s125
      %s142 = sphi 0, %s126
      %s148 = sphi 0, %s150
      %s151 = sphi 0, %s148
      %s152 = sphi 0, %s151
      %s168 = sphi 0, %s152
    $region4: #{tpu_custom_call.1} parent=1 // loop_header_branch
      %21 = sbr.rel (%p19) target = $region8
    $region5: #{tpu_custom_call.1} parent=1 // loop_body
      %s23 = ssub.s32 %s18, 1
      %s24 = ssub.s32 %s18, 2
      %s25 = sadd.s32 %s18, 1
      %s26 = ssub.s32 %s18, %s25
      %p27 = scmp.eq.s32.totalorder %s26, 0
      %s29 = sadd.s32 %s28, 1
      %s30 = scalar_select %p27, %s28, %s29
      %p33 = pneg %p27
      %p34 = scmp.eq.s32.totalorder %s18, 1
      %p35 = por %p33, %p34
      %p36 = scmp.ne.s32.totalorder %s28, %s31
      %p37 = scmp.eq.s32.totalorder %s18, 0
      %p38 = por %p36, %p37
      %p39 = scmp.ne.s32.totalorder %s28, %s31
      %p40 = scmp.eq.s32.totalorder %s23, 1
      %p41 = por %p39, %p40
      %p42 = scmp.ne.s32.totalorder %s31, %s32
      %p43 = scmp.eq.s32.totalorder %s23, 0
      %p44 = por %p42, %p43
      %p45 = scmp.ne.s32.totalorder %s31, %s32
      %p46 = scmp.eq.s32.totalorder %s24, 1
      %p47 = por %p45, %p46
      %p49 = scmp.ne.s32.totalorder %s32, %s48
      %p50 = scmp.eq.s32.totalorder %s24, 0
      %p51 = por %p49, %p50
      %s53 = sadd.s32 %s52, 1
      %p56 = scmp.eq.s32.totalorder %s18, 1
      %p57 = scmp.ne.s32.totalorder %s52, %s54
      %p58 = scmp.eq.s32.totalorder %s18, 0
      %p59 = por %p57, %p58
      %p60 = scmp.ne.s32.totalorder %s52, %s54
      %p61 = scmp.eq.s32.totalorder %s23, 1
      %p62 = por %p60, %p61
      %p63 = scmp.ne.s32.totalorder %s54, %s55
      %p64 = scmp.eq.s32.totalorder %s23, 0
      %p65 = por %p63, %p64
      %p66 = scmp.ne.s32.totalorder %s54, %s55
      %p67 = scmp.eq.s32.totalorder %s24, 1
      %p68 = por %p66, %p67
      %p70 = scmp.ne.s32.totalorder %s55, %s69
      %p71 = scmp.eq.s32.totalorder %s24, 0
      %p72 = por %p70, %p71
      %s73 = ssub.s32 %s18, %s25
      %p74 = scmp.eq.s32.totalorder %s73, 0
      %s76 = sadd.s32 %s75, 1
      %s77 = scalar_select %p74, %s75, %s76
      %p80 = pneg %p74
      %p81 = scmp.eq.s32.totalorder %s18, 1
      %p82 = por %p80, %p81
      %p83 = scmp.ne.s32.totalorder %s75, %s78
      %p84 = scmp.eq.s32.totalorder %s18, 0
      %p85 = por %p83, %p84
      %p86 = scmp.ne.s32.totalorder %s75, %s78
      %p87 = scmp.eq.s32.totalorder %s23, 1
      %p88 = por %p86, %p87
      %p89 = scmp.ne.s32.totalorder %s78, %s79
      %p90 = scmp.eq.s32.totalorder %s23, 0
      %p91 = por %p89, %p90
      %p92 = scmp.ne.s32.totalorder %s78, %s79
      %p93 = scmp.eq.s32.totalorder %s24, 1
      %p94 = por %p92, %p93
      %p96 = scmp.ne.s32.totalorder %s79, %s95
      %p97 = scmp.eq.s32.totalorder %s24, 0
      %p98 = por %p96, %p97
      %s100 = sadd.s32 %s99, 1
      %p103 = scmp.eq.s32.totalorder %s18, 1
      %p104 = scmp.ne.s32.totalorder %s99, %s101
      %p105 = scmp.eq.s32.totalorder %s18, 0
      %p106 = por %p104, %p105
      %p107 = scmp.ne.s32.totalorder %s99, %s101
      %p108 = scmp.eq.s32.totalorder %s23, 1
      %p109 = por %p107, %p108
      %p110 = scmp.ne.s32.totalorder %s101, %s102
      %p111 = scmp.eq.s32.totalorder %s23, 0
      %p112 = por %p110, %p111
      %p113 = scmp.ne.s32.totalorder %s101, %s102
      %p114 = scmp.eq.s32.totalorder %s24, 1
      %p115 = por %p113, %p114
      %p117 = scmp.ne.s32.totalorder %s102, %s116
      %p118 = scmp.eq.s32.totalorder %s24, 0
      %p119 = por %p117, %p118
      %s120 = ssub.s32 %s18, %s25
      %p121 = scmp.eq.s32.totalorder %s120, 0
      %s123 = sadd.s32 %s122, 1
      %s124 = scalar_select %p121, %s122, %s123
      %p127 = pneg %p121
      %p128 = scmp.eq.s32.totalorder %s18, 1
      %p129 = por %p127, %p128
      %p130 = scmp.ne.s32.totalorder %s122, %s125
      %p131 = scmp.eq.s32.totalorder %s18, 0
      %p132 = por %p130, %p131
      %p133 = scmp.ne.s32.totalorder %s122, %s125
      %p134 = scmp.eq.s32.totalorder %s23, 1
      %p135 = por %p133, %p134
      %p136 = scmp.ne.s32.totalorder %s125, %s126
      %p137 = scmp.eq.s32.totalorder %s23, 0
      %p138 = por %p136, %p137
      %p139 = scmp.ne.s32.totalorder %s125, %s126
      %p140 = scmp.eq.s32.totalorder %s24, 1
      %p141 = por %p139, %p140
      %p143 = scmp.ne.s32.totalorder %s126, %s142
      %p144 = scmp.eq.s32.totalorder %s24, 0
      %p145 = por %p143, %p144
      %s146 = ssub.s32 %s18, %s25
      %p147 = scmp.eq.s32.totalorder %s146, 0
      %s149 = sadd.s32 %s148, 1
      %s150 = scalar_select %p147, %s148, %s149
      %p153 = pneg %p147
      %p154 = scmp.eq.s32.totalorder %s18, 1
      %p155 = por %p153, %p154
      %p156 = scmp.ne.s32.totalorder %s148, %s151
      %p157 = scmp.eq.s32.totalorder %s18, 0
      %p158 = por %p156, %p157
      %p159 = scmp.ne.s32.totalorder %s148, %s151
      %p160 = scmp.eq.s32.totalorder %s23, 1
      %p161 = por %p159, %p160
      %p162 = scmp.ne.s32.totalorder %s151, %s152
      %p163 = scmp.eq.s32.totalorder %s23, 0
      %p164 = por %p162, %p163
      %p165 = scmp.ne.s32.totalorder %s151, %s152
      %p166 = scmp.eq.s32.totalorder %s24, 1
      %p167 = por %p165, %p166
      %p169 = scmp.ne.s32.totalorder %s152, %s168
      %p170 = scmp.eq.s32.totalorder %s24, 0
      %p171 = por %p169, %p170
      %p172 = scmp.le.s32.totalorder 1, %s18
      %p173 = scmp.lt.s32.totalorder %s18, 3
      %p174 = pnand %p172, %p173
      %p175 = pneg %p174
      // Predicated region
      $region9: #{tpu_custom_call.1} parent=5 // pred_check
        _
      $region10: #{tpu_custom_call.1} parent=5 // pred_check_branch
        %177 = sbr.rel (%p174) target = $region12
      $region11: #{tpu_custom_call.1} parent=5 // pred_region
        %s178 = ssub.s32 %s18, 1
        // Predicated region
        $region13: #{tpu_custom_call.1} parent=11 // pred_check
          %p179 = pneg %p65
        $region14: #{tpu_custom_call.1} parent=11 // pred_check_branch
          %181 = sbr.rel (%p179) target = $region16
        $region15: #{tpu_custom_call.1} parent=11 // pred_region
          _
        $region16: #{tpu_custom_call.1} parent=11 // pred_fallthru
          _
        // Predicated region
        $region17: #{tpu_custom_call.1} parent=11 // pred_check
          %p182 = pneg %p112
        $region18: #{tpu_custom_call.1} parent=11 // pred_check_branch
          %184 = sbr.rel (%p182) target = $region20
        $region19: #{tpu_custom_call.1} parent=11 // pred_region
          _
        $region20: #{tpu_custom_call.1} parent=11 // pred_fallthru
          _
      $region12: #{tpu_custom_call.1} parent=5 // pred_fallthru
        _
      %p185 = scmp.lt.s32.totalorder %s18, 2
      // Predicated region
      $region21: #{tpu_custom_call.1} parent=5 // pred_check
        %p186 = pneg %p185
      $region22: #{tpu_custom_call.1} parent=5 // pred_check_branch
        %188 = sbr.rel (%p186) target = $region24
      $region23: #{tpu_custom_call.1} parent=5 // pred_region
        // Predicated region
        $region25: #{tpu_custom_call.1} parent=23 // pred_check
          %p189 = pneg %p38
        $region26: #{tpu_custom_call.1} parent=23 // pred_check_branch
          %191 = sbr.rel (%p189) target = $region28
        $region27: #{tpu_custom_call.1} parent=23 // pred_region
          %p192 = scmp.lt.s32.totalorder %s18, 1
          %s193 = scalar_select %p192, %s18, 1
          %s194 = smul.addr %s193, 4
          %s195 = scalar_lea.vmem %s0, %s194
        $region28: #{tpu_custom_call.1} parent=23 // pred_fallthru
          _
        // Predicated region
        $region29: #{tpu_custom_call.1} parent=23 // pred_check
          %p196 = pneg %p85
        $region30: #{tpu_custom_call.1} parent=23 // pred_check_branch
          %198 = sbr.rel (%p196) target = $region32
        $region31: #{tpu_custom_call.1} parent=23 // pred_region
          %p199 = scmp.lt.s32.totalorder %s18, 1
          %s200 = scalar_select %p199, %s18, 1
          %s201 = smul.addr %s200, 16
          %s202 = smul.addr %s201, 8
          %s203 = scalar_lea.vmem %s2, %s202
        $region32: #{tpu_custom_call.1} parent=23 // pred_fallthru
          _
      $region24: #{tpu_custom_call.1} parent=5 // pred_fallthru
        _
      %p204 = scmp.le.s32.totalorder 1, %s18
      %p205 = scmp.lt.s32.totalorder %s18, 3
      %p206 = pnand %p204, %p205
      %p207 = pneg %p206
      // Predicated region
      $region33: #{tpu_custom_call.1} parent=5 // pred_check
        _
      $region34: #{tpu_custom_call.1} parent=5 // pred_check_branch
        %209 = sbr.rel (%p206) target = $region36
      $region35: #{tpu_custom_call.1} parent=5 // pred_region
        %s210 = ssub.s32 %s18, 1
        %p211 = scmp.lt.s32.totalorder %s23, 1
        %s212 = scalar_select %p211, %s23, 1
        %s213 = smul.addr %s212, 4
        %s214 = scalar_lea.vmem %s0, %s213
        %p215 = pneg %p44
        %p216 = pneg %p41
        %p217 = pneg %p65
        %p218 = pneg %p62
        %p219 = scmp.lt.s32.totalorder %s23, 1
        %s220 = scalar_select %p219, %s23, 1
        %s221 = smul.addr %s220, 16
        %s222 = smul.addr %s221, 8
        %s223 = scalar_lea.vmem %s2, %s222
        %p224 = pneg %p91
        %p225 = pneg %p88
        %p226 = pneg %p112
        %p227 = pneg %p109
        %p228 = pneg %p138
        %p229 = pneg %p135
        %s230 = sand.u32 %s125, 1
        %s231 = scalar_lea.sflag [#allocation3], %s230
        %s232 = sand.u32 %s125, 1
        %s233 = smul.addr %s232, 4
        %s234 = scalar_lea.vmem [#allocation2], %s233
        %p235 = pneg %p164
        %p236 = pneg %p161
        %s237 = sand.u32 %s151, 1
        %s238 = scalar_lea.sflag [#allocation5], %s237
        %s239 = sand.u32 %s151, 1
        %s240 = smul.addr %s239, 128
        %s241 = scalar_lea.vmem [#allocation4], %s240
        %p242 = scmp.lt.s32.totalorder %s23, 1
        %s243 = scalar_select %p242, %s23, 1
        %s244 = smul.addr %s243, 4
        %s245 = scalar_lea.vmem %s0, %s244
        %p246 = scmp.lt.s32.totalorder %s23, 1
        %s247 = scalar_select %p246, %s23, 1
        %s248 = smul.addr %s247, 16
        %s249 = smul.addr %s248, 8
        %s250 = scalar_lea.vmem %s2, %s249
        %v251 = vld [vmem:[%s245] sm:$0xf]
        %v252 = vld [vmem:[%s1] sm:$0xf]
        %v253 = vmul.f32 %v251, 0.1
        %v255 = vrot.slane %v252, 2
        %v257 = vmul.f32 %v253, %v255
        %v258 = vadd.f32 %v252, %v257
        %v259 = vmul.f32 %v251, 0.2
        %v260 = vmul.f32 %v259, 1.442695
        %v261 = vpow.pop %v260
        %v262 = vmul.f32 %v252, %v261
        %v263 = vmul.f32 %v262, 0.5
        %v265 = vrot.slane %v263, 2
        %v267 = vsub.f32 %v258, %v265
        %v269 = vrot.slane %v262, 2
        %v271 = vadd.f32 %v267, %v269
        %272 = vst [vmem:[%s234] sm:$0x1] %v267
        %273 = vst [vmem:[%s234] sm:$0x2] %v267
        %274 = vst [vmem:[%s234 + $0x2] sm:$0x1] %v271
        %275 = vst [vmem:[%s234 + $0x2] sm:$0x2] %v271
        %v276 = vsub.f32 %v271, %v267
        %v278 = vrot.slane %v276, 1
        %v280 = vmul.f32 %v276, %v278
        %v281 = vld [vmem:[%s250] sm:$0xff]
        %v282 = vld [vmem:[%s250 + $0x8] sm:$0xff]
        %v283 = vld [vmem:[%s250 + $0x10] sm:$0xff]
        %v284 = vld [vmem:[%s250 + $0x18] sm:$0xff]
        %v285 = vld [vmem:[%s3] sm:$0xff]
        %v286 = vld [vmem:[%s3 + $0x8] sm:$0xff]
        %v287 = vld [vmem:[%s3 + $0x10] sm:$0xff]
        %v288 = vld [vmem:[%s3 + $0x18] sm:$0xff]
        %v289 = vmul.f32 %v281, 0.1
        %v290 = vmul.f32 %v282, 0.1
        %v291 = vmul.f32 %v283, 0.1
        %v292 = vmul.f32 %v284, 0.1
        %297 = vrot.lane.b32.xlu0 %v285, 126
        %v298 = vpop.permute.xlu0 %297
        %299 = vrot.lane.b32.xlu0 %v286, 126
        %v300 = vpop.permute.xlu0 %299
        %301 = vrot.lane.b32.xlu0 %v287, 126
        %v302 = vpop.permute.xlu0 %301
        %303 = vrot.lane.b32.xlu0 %v288, 126
        %v304 = vpop.permute.xlu0 %303
        %v309 = vmul.f32 %v289, %v298
        %v310 = vmul.f32 %v290, %v300
        %v311 = vmul.f32 %v291, %v302
        %v312 = vmul.f32 %v292, %v304
        %v313 = vadd.f32 %v285, %v309
        %v314 = vadd.f32 %v286, %v310
        %v315 = vadd.f32 %v287, %v311
        %v316 = vadd.f32 %v288, %v312
        %v317 = vmul.f32 %v281, 0.2
        %v318 = vmul.f32 %v282, 0.2
        %v319 = vmul.f32 %v283, 0.2
        %v320 = vmul.f32 %v284, 0.2
        %v321 = vmul.f32 %v317, 1.442695
        %v322 = vpow.pop %v321
        %v323 = vmul.f32 %v318, 1.442695
        %v324 = vpow.pop %v323
        %v325 = vmul.f32 %v319, 1.442695
        %v326 = vpow.pop %v325
        %v327 = vmul.f32 %v320, 1.442695
        %v328 = vpow.pop %v327
        %v329 = vmul.f32 %v285, %v322
        %v330 = vmul.f32 %v286, %v324
        %v331 = vmul.f32 %v287, %v326
        %v332 = vmul.f32 %v288, %v328
        %v333 = vmul.f32 %v329, 0.5
        %v334 = vmul.f32 %v330, 0.5
        %v335 = vmul.f32 %v331, 0.5
        %v336 = vmul.f32 %v332, 0.5
        %341 = vrot.lane.b32.xlu0 %v333, 126
        %v342 = vpop.permute.xlu0 %341
        %343 = vrot.lane.b32.xlu0 %v334, 126
        %v344 = vpop.permute.xlu0 %343
        %345 = vrot.lane.b32.xlu0 %v335, 126
        %v346 = vpop.permute.xlu0 %345
        %347 = vrot.lane.b32.xlu0 %v336, 126
        %v348 = vpop.permute.xlu0 %347
        %v353 = vsub.f32 %v313, %v342
        %v354 = vsub.f32 %v314, %v344
        %v355 = vsub.f32 %v315, %v346
        %v356 = vsub.f32 %v316, %v348
        %361 = vrot.lane.b32.xlu0 %v329, 126
        %v362 = vpop.permute.xlu0 %361
        %363 = vrot.lane.b32.xlu0 %v330, 126
        %v364 = vpop.permute.xlu0 %363
        %365 = vrot.lane.b32.xlu0 %v331, 126
        %v366 = vpop.permute.xlu0 %365
        %367 = vrot.lane.b32.xlu0 %v332, 126
        %v368 = vpop.permute.xlu0 %367
        %v373 = vadd.f32 %v353, %v362
        %v374 = vadd.f32 %v354, %v364
        %v375 = vadd.f32 %v355, %v366
        %v376 = vadd.f32 %v356, %v368
        %v377 = vsub.f32 %v373, %v353
        %v378 = vsub.f32 %v374, %v354
        %v379 = vsub.f32 %v375, %v355
        %v380 = vsub.f32 %v376, %v356
        %385 = vrot.lane.b32.xlu0 %v377, 127
        %v386 = vpop.permute.xlu0 %385
        %387 = vrot.lane.b32.xlu0 %v378, 127
        %v388 = vpop.permute.xlu0 %387
        %389 = vrot.lane.b32.xlu0 %v379, 127
        %v390 = vpop.permute.xlu0 %389
        %391 = vrot.lane.b32.xlu0 %v380, 127
        %v392 = vpop.permute.xlu0 %391
        %v397 = vmul.f32 %v377, %v386
        %v398 = vmul.f32 %v378, %v388
        %v399 = vmul.f32 %v379, %v390
        %v400 = vmul.f32 %v380, %v392
        %402 = vset.pattern.permute.xlu0 0
        %403 = vperm.xlu0 %402, %v353
        %v404 = vpop.permute.xlu0 %403
        %407 = vset.pattern.permute.xlu0 0
        %408 = vperm.xlu0 %407, %v354
        %v409 = vpop.permute.xlu0 %408
        %412 = vset.pattern.permute.xlu0 0
        %413 = vperm.xlu0 %412, %v355
        %v414 = vpop.permute.xlu0 %413
        %417 = vset.pattern.permute.xlu0 0
        %418 = vperm.xlu0 %417, %v356
        %v419 = vpop.permute.xlu0 %418
        %v421 = vlaneseq
        %v422 = vshrl.u32 %v421, 7
        %v423 = vsub.s32 0, %v422
        %v424 = vrot.slane %v267, %v423
        %v425 = vmax.f32 %v404, %v424
        %v426 = vmax.f32 %v409, %v424
        %v427 = vmax.f32 %v414, %v424
        %v428 = vmax.f32 %v419, %v424
        %429 = vset.pattern.permute.xlu0 1
        %430 = vperm.xlu0 %429, %v353
        %v431 = vpop.permute.xlu0 %430
        %433 = vset.pattern.permute.xlu0 1
        %434 = vperm.xlu0 %433, %v354
        %v435 = vpop.permute.xlu0 %434
        %437 = vset.pattern.permute.xlu0 1
        %438 = vperm.xlu0 %437, %v355
        %v439 = vpop.permute.xlu0 %438
        %441 = vset.pattern.permute.xlu0 1
        %442 = vperm.xlu0 %441, %v356
        %v443 = vpop.permute.xlu0 %442
        %v445 = vlaneseq
        %v446 = vshrl.u32 %v445, 7
        %v447 = vsub.s32 1, %v446
        %v448 = vrot.slane %v267, %v447
        %v449 = vmax.f32 %v431, %v448
        %v450 = vmax.f32 %v435, %v448
        %v451 = vmax.f32 %v439, %v448
        %v452 = vmax.f32 %v443, %v448
        %454 = vset.pattern.permute.xlu0 0
        %455 = vperm.xlu0 %454, %v373
        %v456 = vpop.permute.xlu0 %455
        %459 = vset.pattern.permute.xlu0 0
        %460 = vperm.xlu0 %459, %v374
        %v461 = vpop.permute.xlu0 %460
        %464 = vset.pattern.permute.xlu0 0
        %465 = vperm.xlu0 %464, %v375
        %v466 = vpop.permute.xlu0 %465
        %469 = vset.pattern.permute.xlu0 0
        %470 = vperm.xlu0 %469, %v376
        %v471 = vpop.permute.xlu0 %470
        %v473 = vlaneseq
        %v474 = vshrl.u32 %v473, 7
        %v475 = vsub.s32 0, %v474
        %v476 = vrot.slane %v271, %v475
        %v477 = vmin.f32 %v456, %v476
        %v478 = vmin.f32 %v461, %v476
        %v479 = vmin.f32 %v466, %v476
        %v480 = vmin.f32 %v471, %v476
        %481 = vset.pattern.permute.xlu0 1
        %482 = vperm.xlu0 %481, %v373
        %v483 = vpop.permute.xlu0 %482
        %485 = vset.pattern.permute.xlu0 1
        %486 = vperm.xlu0 %485, %v374
        %v487 = vpop.permute.xlu0 %486
        %489 = vset.pattern.permute.xlu0 1
        %490 = vperm.xlu0 %489, %v375
        %v491 = vpop.permute.xlu0 %490
        %493 = vset.pattern.permute.xlu0 1
        %494 = vperm.xlu0 %493, %v376
        %v495 = vpop.permute.xlu0 %494
        %v497 = vlaneseq
        %v498 = vshrl.u32 %v497, 7
        %v499 = vsub.s32 1, %v498
        %v500 = vrot.slane %v271, %v499
        %v501 = vmin.f32 %v483, %v500
        %v502 = vmin.f32 %v487, %v500
        %v503 = vmin.f32 %v491, %v500
        %v504 = vmin.f32 %v495, %v500
        %v505 = vsub.f32 %v477, %v425
        %v506 = vsub.f32 %v478, %v426
        %v507 = vsub.f32 %v479, %v427
        %v508 = vsub.f32 %v480, %v428
        %v509 = vmax.f32 %v505, 0.0
        %v510 = vmax.f32 %v506, 0.0
        %v511 = vmax.f32 %v507, 0.0
        %v512 = vmax.f32 %v508, 0.0
        %v513 = vsub.f32 %v501, %v449
        %v514 = vsub.f32 %v502, %v450
        %v515 = vsub.f32 %v503, %v451
        %v516 = vsub.f32 %v504, %v452
        %v517 = vmax.f32 %v513, 0.0
        %v518 = vmax.f32 %v514, 0.0
        %v519 = vmax.f32 %v515, 0.0
        %v520 = vmax.f32 %v516, 0.0
        %v521 = vmul.f32 %v509, %v517
        %v522 = vmul.f32 %v510, %v518
        %v523 = vmul.f32 %v511, %v519
        %v524 = vmul.f32 %v512, %v520
        %526 = vset.pattern.permute.xlu0 0
        %527 = vperm.xlu0 %526, %v397
        %v528 = vpop.permute.xlu0 %527
        %531 = vset.pattern.permute.xlu0 0
        %532 = vperm.xlu0 %531, %v398
        %v533 = vpop.permute.xlu0 %532
        %536 = vset.pattern.permute.xlu0 0
        %537 = vperm.xlu0 %536, %v399
        %v538 = vpop.permute.xlu0 %537
        %541 = vset.pattern.permute.xlu0 0
        %542 = vperm.xlu0 %541, %v400
        %v543 = vpop.permute.xlu0 %542
        %v545 = vlaneseq
        %v546 = vshrl.u32 %v545, 7
        %v547 = vsub.s32 0, %v546
        %v548 = vrot.slane %v280, %v547
        %v549 = vadd.f32 %v528, %v548
        %v550 = vadd.f32 %v533, %v548
        %v551 = vadd.f32 %v538, %v548
        %v552 = vadd.f32 %v543, %v548
        %v553 = vsub.f32 %v549, %v521
        %v554 = vsub.f32 %v550, %v522
        %v555 = vsub.f32 %v551, %v523
        %v556 = vsub.f32 %v552, %v524
        %v557 = vmax.f32 %v553, 1e-12
        %v558 = vmax.f32 %v554, 1e-12
        %v559 = vmax.f32 %v555, 1e-12
        %v560 = vmax.f32 %v556, 1e-12
        %v561 = vrcp.pop %v557
        %v562 = vrcp.pop %v558
        %v563 = vrcp.pop %v559
        %v564 = vrcp.pop %v560
        %v565 = vmul.f32 %v521, %v561
        %v566 = vmul.f32 %v522, %v562
        %v567 = vmul.f32 %v523, %v563
        %v568 = vmul.f32 %v524, %v564
        %569 = vst [vmem:[%s241] sm:$0xff] %v565
        %570 = vst [vmem:[%s241 + $0x8] sm:$0xff] %v566
        %571 = vst [vmem:[%s241 + $0x10] sm:$0xff] %v567
        %572 = vst [vmem:[%s241 + $0x18] sm:$0xff] %v568
        %v573 = vld [vmem:[%s250 + $0x20] sm:$0xff]
        %v574 = vld [vmem:[%s250 + $0x28] sm:$0xff]
        %v575 = vld [vmem:[%s250 + $0x30] sm:$0xff]
        %v576 = vld [vmem:[%s250 + $0x38] sm:$0xff]
        %v577 = vld [vmem:[%s3 + $0x20] sm:$0xff]
        %v578 = vld [vmem:[%s3 + $0x28] sm:$0xff]
        %v579 = vld [vmem:[%s3 + $0x30] sm:$0xff]
        %v580 = vld [vmem:[%s3 + $0x38] sm:$0xff]
        %v581 = vmul.f32 %v573, 0.1
        %v582 = vmul.f32 %v574, 0.1
        %v583 = vmul.f32 %v575, 0.1
        %v584 = vmul.f32 %v576, 0.1
        %589 = vrot.lane.b32.xlu0 %v577, 126
        %v590 = vpop.permute.xlu0 %589
        %591 = vrot.lane.b32.xlu0 %v578, 126
        %v592 = vpop.permute.xlu0 %591
        %593 = vrot.lane.b32.xlu0 %v579, 126
        %v594 = vpop.permute.xlu0 %593
        %595 = vrot.lane.b32.xlu0 %v580, 126
        %v596 = vpop.permute.xlu0 %595
        %v601 = vmul.f32 %v581, %v590
        %v602 = vmul.f32 %v582, %v592
        %v603 = vmul.f32 %v583, %v594
        %v604 = vmul.f32 %v584, %v596
        %v605 = vadd.f32 %v577, %v601
        %v606 = vadd.f32 %v578, %v602
        %v607 = vadd.f32 %v579, %v603
        %v608 = vadd.f32 %v580, %v604
        %v609 = vmul.f32 %v573, 0.2
        %v610 = vmul.f32 %v574, 0.2
        %v611 = vmul.f32 %v575, 0.2
        %v612 = vmul.f32 %v576, 0.2
        %v613 = vmul.f32 %v609, 1.442695
        %v614 = vpow.pop %v613
        %v615 = vmul.f32 %v610, 1.442695
        %v616 = vpow.pop %v615
        %v617 = vmul.f32 %v611, 1.442695
        %v618 = vpow.pop %v617
        %v619 = vmul.f32 %v612, 1.442695
        %v620 = vpow.pop %v619
        %v621 = vmul.f32 %v577, %v614
        %v622 = vmul.f32 %v578, %v616
        %v623 = vmul.f32 %v579, %v618
        %v624 = vmul.f32 %v580, %v620
        %v625 = vmul.f32 %v621, 0.5
        %v626 = vmul.f32 %v622, 0.5
        %v627 = vmul.f32 %v623, 0.5
        %v628 = vmul.f32 %v624, 0.5
        %633 = vrot.lane.b32.xlu0 %v625, 126
        %v634 = vpop.permute.xlu0 %633
        %635 = vrot.lane.b32.xlu0 %v626, 126
        %v636 = vpop.permute.xlu0 %635
        %637 = vrot.lane.b32.xlu0 %v627, 126
        %v638 = vpop.permute.xlu0 %637
        %639 = vrot.lane.b32.xlu0 %v628, 126
        %v640 = vpop.permute.xlu0 %639
        %v645 = vsub.f32 %v605, %v634
        %v646 = vsub.f32 %v606, %v636
        %v647 = vsub.f32 %v607, %v638
        %v648 = vsub.f32 %v608, %v640
        %653 = vrot.lane.b32.xlu0 %v621, 126
        %v654 = vpop.permute.xlu0 %653
        %655 = vrot.lane.b32.xlu0 %v622, 126
        %v656 = vpop.permute.xlu0 %655
        %657 = vrot.lane.b32.xlu0 %v623, 126
        %v658 = vpop.permute.xlu0 %657
        %659 = vrot.lane.b32.xlu0 %v624, 126
        %v660 = vpop.permute.xlu0 %659
        %v665 = vadd.f32 %v645, %v654
        %v666 = vadd.f32 %v646, %v656
        %v667 = vadd.f32 %v647, %v658
        %v668 = vadd.f32 %v648, %v660
        %v669 = vsub.f32 %v665, %v645
        %v670 = vsub.f32 %v666, %v646
        %v671 = vsub.f32 %v667, %v647
        %v672 = vsub.f32 %v668, %v648
        %677 = vrot.lane.b32.xlu0 %v669, 127
        %v678 = vpop.permute.xlu0 %677
        %679 = vrot.lane.b32.xlu0 %v670, 127
        %v680 = vpop.permute.xlu0 %679
        %681 = vrot.lane.b32.xlu0 %v671, 127
        %v682 = vpop.permute.xlu0 %681
        %683 = vrot.lane.b32.xlu0 %v672, 127
        %v684 = vpop.permute.xlu0 %683
        %v689 = vmul.f32 %v669, %v678
        %v690 = vmul.f32 %v670, %v680
        %v691 = vmul.f32 %v671, %v682
        %v692 = vmul.f32 %v672, %v684
        %694 = vset.pattern.permute.xlu0 0
        %695 = vperm.xlu0 %694, %v645
        %v696 = vpop.permute.xlu0 %695
        %699 = vset.pattern.permute.xlu0 0
        %700 = vperm.xlu0 %699, %v646
        %v701 = vpop.permute.xlu0 %700
        %704 = vset.pattern.permute.xlu0 0
        %705 = vperm.xlu0 %704, %v647
        %v706 = vpop.permute.xlu0 %705
        %709 = vset.pattern.permute.xlu0 0
        %710 = vperm.xlu0 %709, %v648
        %v711 = vpop.permute.xlu0 %710
        %v713 = vmax.f32 %v696, %v424
        %v714 = vmax.f32 %v701, %v424
        %v715 = vmax.f32 %v706, %v424
        %v716 = vmax.f32 %v711, %v424
        %717 = vset.pattern.permute.xlu0 1
        %718 = vperm.xlu0 %717, %v645
        %v719 = vpop.permute.xlu0 %718
        %721 = vset.pattern.permute.xlu0 1
        %722 = vperm.xlu0 %721, %v646
        %v723 = vpop.permute.xlu0 %722
        %725 = vset.pattern.permute.xlu0 1
        %726 = vperm.xlu0 %725, %v647
        %v727 = vpop.permute.xlu0 %726
        %729 = vset.pattern.permute.xlu0 1
        %730 = vperm.xlu0 %729, %v648
        %v731 = vpop.permute.xlu0 %730
        %v733 = vmax.f32 %v719, %v448
        %v734 = vmax.f32 %v723, %v448
        %v735 = vmax.f32 %v727, %v448
        %v736 = vmax.f32 %v731, %v448
        %738 = vset.pattern.permute.xlu0 0
        %739 = vperm.xlu0 %738, %v665
        %v740 = vpop.permute.xlu0 %739
        %743 = vset.pattern.permute.xlu0 0
        %744 = vperm.xlu0 %743, %v666
        %v745 = vpop.permute.xlu0 %744
        %748 = vset.pattern.permute.xlu0 0
        %749 = vperm.xlu0 %748, %v667
        %v750 = vpop.permute.xlu0 %749
        %753 = vset.pattern.permute.xlu0 0
        %754 = vperm.xlu0 %753, %v668
        %v755 = vpop.permute.xlu0 %754
        %v757 = vmin.f32 %v740, %v476
        %v758 = vmin.f32 %v745, %v476
        %v759 = vmin.f32 %v750, %v476
        %v760 = vmin.f32 %v755, %v476
        %761 = vset.pattern.permute.xlu0 1
        %762 = vperm.xlu0 %761, %v665
        %v763 = vpop.permute.xlu0 %762
        %765 = vset.pattern.permute.xlu0 1
        %766 = vperm.xlu0 %765, %v666
        %v767 = vpop.permute.xlu0 %766
        %769 = vset.pattern.permute.xlu0 1
        %770 = vperm.xlu0 %769, %v667
        %v771 = vpop.permute.xlu0 %770
        %773 = vset.pattern.permute.xlu0 1
        %774 = vperm.xlu0 %773, %v668
        %v775 = vpop.permute.xlu0 %774
        %v777 = vmin.f32 %v763, %v500
        %v778 = vmin.f32 %v767, %v500
        %v779 = vmin.f32 %v771, %v500
        %v780 = vmin.f32 %v775, %v500
        %v781 = vsub.f32 %v757, %v713
        %v782 = vsub.f32 %v758, %v714
        %v783 = vsub.f32 %v759, %v715
        %v784 = vsub.f32 %v760, %v716
        %v785 = vmax.f32 %v781, 0.0
        %v786 = vmax.f32 %v782, 0.0
        %v787 = vmax.f32 %v783, 0.0
        %v788 = vmax.f32 %v784, 0.0
        %v789 = vsub.f32 %v777, %v733
        %v790 = vsub.f32 %v778, %v734
        %v791 = vsub.f32 %v779, %v735
        %v792 = vsub.f32 %v780, %v736
        %v793 = vmax.f32 %v789, 0.0
        %v794 = vmax.f32 %v790, 0.0
        %v795 = vmax.f32 %v791, 0.0
        %v796 = vmax.f32 %v792, 0.0
        %v797 = vmul.f32 %v785, %v793
        %v798 = vmul.f32 %v786, %v794
        %v799 = vmul.f32 %v787, %v795
        %v800 = vmul.f32 %v788, %v796
        %802 = vset.pattern.permute.xlu0 0
        %803 = vperm.xlu0 %802, %v689
        %v804 = vpop.permute.xlu0 %803
        %807 = vset.pattern.permute.xlu0 0
        %808 = vperm.xlu0 %807, %v690
        %v809 = vpop.permute.xlu0 %808
        %812 = vset.pattern.permute.xlu0 0
        %813 = vperm.xlu0 %812, %v691
        %v814 = vpop.permute.xlu0 %813
        %817 = vset.pattern.permute.xlu0 0
        %818 = vperm.xlu0 %817, %v692
        %v819 = vpop.permute.xlu0 %818
        %v821 = vadd.f32 %v804, %v548
        %v822 = vadd.f32 %v809, %v548
        %v823 = vadd.f32 %v814, %v548
        %v824 = vadd.f32 %v819, %v548
        %v825 = vsub.f32 %v821, %v797
        %v826 = vsub.f32 %v822, %v798
        %v827 = vsub.f32 %v823, %v799
        %v828 = vsub.f32 %v824, %v800
        %v829 = vmax.f32 %v825, 1e-12
        %v830 = vmax.f32 %v826, 1e-12
        %v831 = vmax.f32 %v827, 1e-12
        %v832 = vmax.f32 %v828, 1e-12
        %v833 = vrcp.pop %v829
        %v834 = vrcp.pop %v830
        %v835 = vrcp.pop %v831
        %v836 = vrcp.pop %v832
        %v837 = vmul.f32 %v797, %v833
        %v838 = vmul.f32 %v798, %v834
        %v839 = vmul.f32 %v799, %v835
        %v840 = vmul.f32 %v800, %v836
        %841 = vst [vmem:[%s241 + $0x20] sm:$0xff] %v837
        %842 = vst [vmem:[%s241 + $0x28] sm:$0xff] %v838
        %843 = vst [vmem:[%s241 + $0x30] sm:$0xff] %v839
        %844 = vst [vmem:[%s241 + $0x38] sm:$0xff] %v840
        %v845 = vld [vmem:[%s250 + $0x40] sm:$0xff]
        %v846 = vld [vmem:[%s250 + $0x48] sm:$0xff]
        %v847 = vld [vmem:[%s250 + $0x50] sm:$0xff]
        %v848 = vld [vmem:[%s250 + $0x58] sm:$0xff]
        %v849 = vld [vmem:[%s3 + $0x40] sm:$0xff]
        %v850 = vld [vmem:[%s3 + $0x48] sm:$0xff]
        %v851 = vld [vmem:[%s3 + $0x50] sm:$0xff]
        %v852 = vld [vmem:[%s3 + $0x58] sm:$0xff]
        %v853 = vmul.f32 %v845, 0.1
        %v854 = vmul.f32 %v846, 0.1
        %v855 = vmul.f32 %v847, 0.1
        %v856 = vmul.f32 %v848, 0.1
        %861 = vrot.lane.b32.xlu0 %v849, 126
        %v862 = vpop.permute.xlu0 %861
        %863 = vrot.lane.b32.xlu0 %v850, 126
        %v864 = vpop.permute.xlu0 %863
        %865 = vrot.lane.b32.xlu0 %v851, 126
        %v866 = vpop.permute.xlu0 %865
        %867 = vrot.lane.b32.xlu0 %v852, 126
        %v868 = vpop.permute.xlu0 %867
        %v873 = vmul.f32 %v853, %v862
        %v874 = vmul.f32 %v854, %v864
        %v875 = vmul.f32 %v855, %v866
        %v876 = vmul.f32 %v856, %v868
        %v877 = vadd.f32 %v849, %v873
        %v878 = vadd.f32 %v850, %v874
        %v879 = vadd.f32 %v851, %v875
        %v880 = vadd.f32 %v852, %v876
        %v881 = vmul.f32 %v845, 0.2
        %v882 = vmul.f32 %v846, 0.2
        %v883 = vmul.f32 %v847, 0.2
        %v884 = vmul.f32 %v848, 0.2
        %v885 = vmul.f32 %v881, 1.442695
        %v886 = vpow.pop %v885
        %v887 = vmul.f32 %v882, 1.442695
        %v888 = vpow.pop %v887
        %v889 = vmul.f32 %v883, 1.442695
        %v890 = vpow.pop %v889
        %v891 = vmul.f32 %v884, 1.442695
        %v892 = vpow.pop %v891
        %v893 = vmul.f32 %v849, %v886
        %v894 = vmul.f32 %v850, %v888
        %v895 = vmul.f32 %v851, %v890
        %v896 = vmul.f32 %v852, %v892
        %v897 = vmul.f32 %v893, 0.5
        %v898 = vmul.f32 %v894, 0.5
        %v899 = vmul.f32 %v895, 0.5
        %v900 = vmul.f32 %v896, 0.5
        %905 = vrot.lane.b32.xlu0 %v897, 126
        %v906 = vpop.permute.xlu0 %905
        %907 = vrot.lane.b32.xlu0 %v898, 126
        %v908 = vpop.permute.xlu0 %907
        %909 = vrot.lane.b32.xlu0 %v899, 126
        %v910 = vpop.permute.xlu0 %909
        %911 = vrot.lane.b32.xlu0 %v900, 126
        %v912 = vpop.permute.xlu0 %911
        %v917 = vsub.f32 %v877, %v906
        %v918 = vsub.f32 %v878, %v908
        %v919 = vsub.f32 %v879, %v910
        %v920 = vsub.f32 %v880, %v912
        %925 = vrot.lane.b32.xlu0 %v893, 126
        %v926 = vpop.permute.xlu0 %925
        %927 = vrot.lane.b32.xlu0 %v894, 126
        %v928 = vpop.permute.xlu0 %927
        %929 = vrot.lane.b32.xlu0 %v895, 126
        %v930 = vpop.permute.xlu0 %929
        %931 = vrot.lane.b32.xlu0 %v896, 126
        %v932 = vpop.permute.xlu0 %931
        %v937 = vadd.f32 %v917, %v926
        %v938 = vadd.f32 %v918, %v928
        %v939 = vadd.f32 %v919, %v930
        %v940 = vadd.f32 %v920, %v932
        %v941 = vsub.f32 %v937, %v917
        %v942 = vsub.f32 %v938, %v918
        %v943 = vsub.f32 %v939, %v919
        %v944 = vsub.f32 %v940, %v920
        %949 = vrot.lane.b32.xlu0 %v941, 127
        %v950 = vpop.permute.xlu0 %949
        %951 = vrot.lane.b32.xlu0 %v942, 127
        %v952 = vpop.permute.xlu0 %951
        %953 = vrot.lane.b32.xlu0 %v943, 127
        %v954 = vpop.permute.xlu0 %953
        %955 = vrot.lane.b32.xlu0 %v944, 127
        %v956 = vpop.permute.xlu0 %955
        %v961 = vmul.f32 %v941, %v950
        %v962 = vmul.f32 %v942, %v952
        %v963 = vmul.f32 %v943, %v954
        %v964 = vmul.f32 %v944, %v956
        %966 = vset.pattern.permute.xlu0 0
        %967 = vperm.xlu0 %966, %v917
        %v968 = vpop.permute.xlu0 %967
        %971 = vset.pattern.permute.xlu0 0
        %972 = vperm.xlu0 %971, %v918
        %v973 = vpop.permute.xlu0 %972
        %976 = vset.pattern.permute.xlu0 0
        %977 = vperm.xlu0 %976, %v919
        %v978 = vpop.permute.xlu0 %977
        %981 = vset.pattern.permute.xlu0 0
        %982 = vperm.xlu0 %981, %v920
        %v983 = vpop.permute.xlu0 %982
        %v985 = vmax.f32 %v968, %v424
        %v986 = vmax.f32 %v973, %v424
        %v987 = vmax.f32 %v978, %v424
        %v988 = vmax.f32 %v983, %v424
        %989 = vset.pattern.permute.xlu0 1
        %990 = vperm.xlu0 %989, %v917
        %v991 = vpop.permute.xlu0 %990
        %993 = vset.pattern.permute.xlu0 1
        %994 = vperm.xlu0 %993, %v918
        %v995 = vpop.permute.xlu0 %994
        %997 = vset.pattern.permute.xlu0 1
        %998 = vperm.xlu0 %997, %v919
        %v999 = vpop.permute.xlu0 %998
        %1001 = vset.pattern.permute.xlu0 1
        %1002 = vperm.xlu0 %1001, %v920
        %v1003 = vpop.permute.xlu0 %1002
        %v1005 = vmax.f32 %v991, %v448
        %v1006 = vmax.f32 %v995, %v448
        %v1007 = vmax.f32 %v999, %v448
        %v1008 = vmax.f32 %v1003, %v448
        %1010 = vset.pattern.permute.xlu0 0
        %1011 = vperm.xlu0 %1010, %v937
        %v1012 = vpop.permute.xlu0 %1011
        %1015 = vset.pattern.permute.xlu0 0
        %1016 = vperm.xlu0 %1015, %v938
        %v1017 = vpop.permute.xlu0 %1016
        %1020 = vset.pattern.permute.xlu0 0
        %1021 = vperm.xlu0 %1020, %v939
        %v1022 = vpop.permute.xlu0 %1021
        %1025 = vset.pattern.permute.xlu0 0
        %1026 = vperm.xlu0 %1025, %v940
        %v1027 = vpop.permute.xlu0 %1026
        %v1029 = vmin.f32 %v1012, %v476
        %v1030 = vmin.f32 %v1017, %v476
        %v1031 = vmin.f32 %v1022, %v476
        %v1032 = vmin.f32 %v1027, %v476
        %1033 = vset.pattern.permute.xlu0 1
        %1034 = vperm.xlu0 %1033, %v937
        %v1035 = vpop.permute.xlu0 %1034
        %1037 = vset.pattern.permute.xlu0 1
        %1038 = vperm.xlu0 %1037, %v938
        %v1039 = vpop.permute.xlu0 %1038
        %1041 = vset.pattern.permute.xlu0 1
        %1042 = vperm.xlu0 %1041, %v939
        %v1043 = vpop.permute.xlu0 %1042
        %1045 = vset.pattern.permute.xlu0 1
        %1046 = vperm.xlu0 %1045, %v940
        %v1047 = vpop.permute.xlu0 %1046
        %v1049 = vmin.f32 %v1035, %v500
        %v1050 = vmin.f32 %v1039, %v500
        %v1051 = vmin.f32 %v1043, %v500
        %v1052 = vmin.f32 %v1047, %v500
        %v1053 = vsub.f32 %v1029, %v985
        %v1054 = vsub.f32 %v1030, %v986
        %v1055 = vsub.f32 %v1031, %v987
        %v1056 = vsub.f32 %v1032, %v988
        %v1057 = vmax.f32 %v1053, 0.0
        %v1058 = vmax.f32 %v1054, 0.0
        %v1059 = vmax.f32 %v1055, 0.0
        %v1060 = vmax.f32 %v1056, 0.0
        %v1061 = vsub.f32 %v1049, %v1005
        %v1062 = vsub.f32 %v1050, %v1006
        %v1063 = vsub.f32 %v1051, %v1007
        %v1064 = vsub.f32 %v1052, %v1008
        %v1065 = vmax.f32 %v1061, 0.0
        %v1066 = vmax.f32 %v1062, 0.0
        %v1067 = vmax.f32 %v1063, 0.0
        %v1068 = vmax.f32 %v1064, 0.0
        %v1069 = vmul.f32 %v1057, %v1065
        %v1070 = vmul.f32 %v1058, %v1066
        %v1071 = vmul.f32 %v1059, %v1067
        %v1072 = vmul.f32 %v1060, %v1068
        %1074 = vset.pattern.permute.xlu0 0
        %1075 = vperm.xlu0 %1074, %v961
        %v1076 = vpop.permute.xlu0 %1075
        %1079 = vset.pattern.permute.xlu0 0
        %1080 = vperm.xlu0 %1079, %v962
        %v1081 = vpop.permute.xlu0 %1080
        %1084 = vset.pattern.permute.xlu0 0
        %1085 = vperm.xlu0 %1084, %v963
        %v1086 = vpop.permute.xlu0 %1085
        %1089 = vset.pattern.permute.xlu0 0
        %1090 = vperm.xlu0 %1089, %v964
        %v1091 = vpop.permute.xlu0 %1090
        %v1093 = vadd.f32 %v1076, %v548
        %v1094 = vadd.f32 %v1081, %v548
        %v1095 = vadd.f32 %v1086, %v548
        %v1096 = vadd.f32 %v1091, %v548
        %v1097 = vsub.f32 %v1093, %v1069
        %v1098 = vsub.f32 %v1094, %v1070
        %v1099 = vsub.f32 %v1095, %v1071
        %v1100 = vsub.f32 %v1096, %v1072
        %v1101 = vmax.f32 %v1097, 1e-12
        %v1102 = vmax.f32 %v1098, 1e-12
        %v1103 = vmax.f32 %v1099, 1e-12
        %v1104 = vmax.f32 %v1100, 1e-12
        %v1105 = vrcp.pop %v1101
        %v1106 = vrcp.pop %v1102
        %v1107 = vrcp.pop %v1103
        %v1108 = vrcp.pop %v1104
        %v1109 = vmul.f32 %v1069, %v1105
        %v1110 = vmul.f32 %v1070, %v1106
        %v1111 = vmul.f32 %v1071, %v1107
        %v1112 = vmul.f32 %v1072, %v1108
        %1113 = vst [vmem:[%s241 + $0x40] sm:$0xff] %v1109
        %1114 = vst [vmem:[%s241 + $0x48] sm:$0xff] %v1110
        %1115 = vst [vmem:[%s241 + $0x50] sm:$0xff] %v1111
        %1116 = vst [vmem:[%s241 + $0x58] sm:$0xff] %v1112
        %v1117 = vld [vmem:[%s250 + $0x60] sm:$0xff]
        %v1118 = vld [vmem:[%s250 + $0x68] sm:$0xff]
        %v1119 = vld [vmem:[%s250 + $0x70] sm:$0xff]
        %v1120 = vld [vmem:[%s250 + $0x78] sm:$0xff]
        %v1121 = vld [vmem:[%s3 + $0x60] sm:$0xff]
        %v1122 = vld [vmem:[%s3 + $0x68] sm:$0xff]
        %v1123 = vld [vmem:[%s3 + $0x70] sm:$0xff]
        %v1124 = vld [vmem:[%s3 + $0x78] sm:$0xff]
        %v1125 = vmul.f32 %v1117, 0.1
        %v1126 = vmul.f32 %v1118, 0.1
        %v1127 = vmul.f32 %v1119, 0.1
        %v1128 = vmul.f32 %v1120, 0.1
        %1133 = vrot.lane.b32.xlu0 %v1121, 126
        %v1134 = vpop.permute.xlu0 %1133
        %1135 = vrot.lane.b32.xlu0 %v1122, 126
        %v1136 = vpop.permute.xlu0 %1135
        %1137 = vrot.lane.b32.xlu0 %v1123, 126
        %v1138 = vpop.permute.xlu0 %1137
        %1139 = vrot.lane.b32.xlu0 %v1124, 126
        %v1140 = vpop.permute.xlu0 %1139
        %v1145 = vmul.f32 %v1125, %v1134
        %v1146 = vmul.f32 %v1126, %v1136
        %v1147 = vmul.f32 %v1127, %v1138
        %v1148 = vmul.f32 %v1128, %v1140
        %v1149 = vadd.f32 %v1121, %v1145
        %v1150 = vadd.f32 %v1122, %v1146
        %v1151 = vadd.f32 %v1123, %v1147
        %v1152 = vadd.f32 %v1124, %v1148
        %v1153 = vmul.f32 %v1117, 0.2
        %v1154 = vmul.f32 %v1118, 0.2
        %v1155 = vmul.f32 %v1119, 0.2
        %v1156 = vmul.f32 %v1120, 0.2
        %v1157 = vmul.f32 %v1153, 1.442695
        %v1158 = vpow.pop %v1157
        %v1159 = vmul.f32 %v1154, 1.442695
        %v1160 = vpow.pop %v1159
        %v1161 = vmul.f32 %v1155, 1.442695
        %v1162 = vpow.pop %v1161
        %v1163 = vmul.f32 %v1156, 1.442695
        %v1164 = vpow.pop %v1163
        %v1165 = vmul.f32 %v1121, %v1158
        %v1166 = vmul.f32 %v1122, %v1160
        %v1167 = vmul.f32 %v1123, %v1162
        %v1168 = vmul.f32 %v1124, %v1164
        %v1169 = vmul.f32 %v1165, 0.5
        %v1170 = vmul.f32 %v1166, 0.5
        %v1171 = vmul.f32 %v1167, 0.5
        %v1172 = vmul.f32 %v1168, 0.5
        %1177 = vrot.lane.b32.xlu0 %v1169, 126
        %v1178 = vpop.permute.xlu0 %1177
        %1179 = vrot.lane.b32.xlu0 %v1170, 126
        %v1180 = vpop.permute.xlu0 %1179
        %1181 = vrot.lane.b32.xlu0 %v1171, 126
        %v1182 = vpop.permute.xlu0 %1181
        %1183 = vrot.lane.b32.xlu0 %v1172, 126
        %v1184 = vpop.permute.xlu0 %1183
        %v1189 = vsub.f32 %v1149, %v1178
        %v1190 = vsub.f32 %v1150, %v1180
        %v1191 = vsub.f32 %v1151, %v1182
        %v1192 = vsub.f32 %v1152, %v1184
        %1197 = vrot.lane.b32.xlu0 %v1165, 126
        %v1198 = vpop.permute.xlu0 %1197
        %1199 = vrot.lane.b32.xlu0 %v1166, 126
        %v1200 = vpop.permute.xlu0 %1199
        %1201 = vrot.lane.b32.xlu0 %v1167, 126
        %v1202 = vpop.permute.xlu0 %1201
        %1203 = vrot.lane.b32.xlu0 %v1168, 126
        %v1204 = vpop.permute.xlu0 %1203
        %v1209 = vadd.f32 %v1189, %v1198
        %v1210 = vadd.f32 %v1190, %v1200
        %v1211 = vadd.f32 %v1191, %v1202
        %v1212 = vadd.f32 %v1192, %v1204
        %v1213 = vsub.f32 %v1209, %v1189
        %v1214 = vsub.f32 %v1210, %v1190
        %v1215 = vsub.f32 %v1211, %v1191
        %v1216 = vsub.f32 %v1212, %v1192
        %1221 = vrot.lane.b32.xlu0 %v1213, 127
        %v1222 = vpop.permute.xlu0 %1221
        %1223 = vrot.lane.b32.xlu0 %v1214, 127
        %v1224 = vpop.permute.xlu0 %1223
        %1225 = vrot.lane.b32.xlu0 %v1215, 127
        %v1226 = vpop.permute.xlu0 %1225
        %1227 = vrot.lane.b32.xlu0 %v1216, 127
        %v1228 = vpop.permute.xlu0 %1227
        %v1233 = vmul.f32 %v1213, %v1222
        %v1234 = vmul.f32 %v1214, %v1224
        %v1235 = vmul.f32 %v1215, %v1226
        %v1236 = vmul.f32 %v1216, %v1228
        %1238 = vset.pattern.permute.xlu0 0
        %1239 = vperm.xlu0 %1238, %v1189
        %v1240 = vpop.permute.xlu0 %1239
        %1243 = vset.pattern.permute.xlu0 0
        %1244 = vperm.xlu0 %1243, %v1190
        %v1245 = vpop.permute.xlu0 %1244
        %1248 = vset.pattern.permute.xlu0 0
        %1249 = vperm.xlu0 %1248, %v1191
        %v1250 = vpop.permute.xlu0 %1249
        %1253 = vset.pattern.permute.xlu0 0
        %1254 = vperm.xlu0 %1253, %v1192
        %v1255 = vpop.permute.xlu0 %1254
        %v1257 = vmax.f32 %v1240, %v424
        %v1258 = vmax.f32 %v1245, %v424
        %v1259 = vmax.f32 %v1250, %v424
        %v1260 = vmax.f32 %v1255, %v424
        %1261 = vset.pattern.permute.xlu0 1
        %1262 = vperm.xlu0 %1261, %v1189
        %v1263 = vpop.permute.xlu0 %1262
        %1265 = vset.pattern.permute.xlu0 1
        %1266 = vperm.xlu0 %1265, %v1190
        %v1267 = vpop.permute.xlu0 %1266
        %1269 = vset.pattern.permute.xlu0 1
        %1270 = vperm.xlu0 %1269, %v1191
        %v1271 = vpop.permute.xlu0 %1270
        %1273 = vset.pattern.permute.xlu0 1
        %1274 = vperm.xlu0 %1273, %v1192
        %v1275 = vpop.permute.xlu0 %1274
        %v1277 = vmax.f32 %v1263, %v448
        %v1278 = vmax.f32 %v1267, %v448
        %v1279 = vmax.f32 %v1271, %v448
        %v1280 = vmax.f32 %v1275, %v448
        %1282 = vset.pattern.permute.xlu0 0
        %1283 = vperm.xlu0 %1282, %v1209
        %v1284 = vpop.permute.xlu0 %1283
        %1287 = vset.pattern.permute.xlu0 0
        %1288 = vperm.xlu0 %1287, %v1210
        %v1289 = vpop.permute.xlu0 %1288
        %1292 = vset.pattern.permute.xlu0 0
        %1293 = vperm.xlu0 %1292, %v1211
        %v1294 = vpop.permute.xlu0 %1293
        %1297 = vset.pattern.permute.xlu0 0
        %1298 = vperm.xlu0 %1297, %v1212
        %v1299 = vpop.permute.xlu0 %1298
        %v1301 = vmin.f32 %v1284, %v476
        %v1302 = vmin.f32 %v1289, %v476
        %v1303 = vmin.f32 %v1294, %v476
        %v1304 = vmin.f32 %v1299, %v476
        %1305 = vset.pattern.permute.xlu0 1
        %1306 = vperm.xlu0 %1305, %v1209
        %v1307 = vpop.permute.xlu0 %1306
        %1309 = vset.pattern.permute.xlu0 1
        %1310 = vperm.xlu0 %1309, %v1210
        %v1311 = vpop.permute.xlu0 %1310
        %1313 = vset.pattern.permute.xlu0 1
        %1314 = vperm.xlu0 %1313, %v1211
        %v1315 = vpop.permute.xlu0 %1314
        %1317 = vset.pattern.permute.xlu0 1
        %1318 = vperm.xlu0 %1317, %v1212
        %v1319 = vpop.permute.xlu0 %1318
        %v1321 = vmin.f32 %v1307, %v500
        %v1322 = vmin.f32 %v1311, %v500
        %v1323 = vmin.f32 %v1315, %v500
        %v1324 = vmin.f32 %v1319, %v500
        %v1325 = vsub.f32 %v1301, %v1257
        %v1326 = vsub.f32 %v1302, %v1258
        %v1327 = vsub.f32 %v1303, %v1259
        %v1328 = vsub.f32 %v1304, %v1260
        %v1329 = vmax.f32 %v1325, 0.0
        %v1330 = vmax.f32 %v1326, 0.0
        %v1331 = vmax.f32 %v1327, 0.0
        %v1332 = vmax.f32 %v1328, 0.0
        %v1333 = vsub.f32 %v1321, %v1277
        %v1334 = vsub.f32 %v1322, %v1278
        %v1335 = vsub.f32 %v1323, %v1279
        %v1336 = vsub.f32 %v1324, %v1280
        %v1337 = vmax.f32 %v1333, 0.0
        %v1338 = vmax.f32 %v1334, 0.0
        %v1339 = vmax.f32 %v1335, 0.0
        %v1340 = vmax.f32 %v1336, 0.0
        %v1341 = vmul.f32 %v1329, %v1337
        %v1342 = vmul.f32 %v1330, %v1338
        %v1343 = vmul.f32 %v1331, %v1339
        %v1344 = vmul.f32 %v1332, %v1340
        %1346 = vset.pattern.permute.xlu0 0
        %1347 = vperm.xlu0 %1346, %v1233
        %v1348 = vpop.permute.xlu0 %1347
        %1351 = vset.pattern.permute.xlu0 0
        %1352 = vperm.xlu0 %1351, %v1234
        %v1353 = vpop.permute.xlu0 %1352
        %1356 = vset.pattern.permute.xlu0 0
        %1357 = vperm.xlu0 %1356, %v1235
        %v1358 = vpop.permute.xlu0 %1357
        %1361 = vset.pattern.permute.xlu0 0
        %1362 = vperm.xlu0 %1361, %v1236
        %v1363 = vpop.permute.xlu0 %1362
        %v1365 = vadd.f32 %v1348, %v548
        %v1366 = vadd.f32 %v1353, %v548
        %v1367 = vadd.f32 %v1358, %v548
        %v1368 = vadd.f32 %v1363, %v548
        %v1369 = vsub.f32 %v1365, %v1341
        %v1370 = vsub.f32 %v1366, %v1342
        %v1371 = vsub.f32 %v1367, %v1343
        %v1372 = vsub.f32 %v1368, %v1344
        %v1373 = vmax.f32 %v1369, 1e-12
        %v1374 = vmax.f32 %v1370, 1e-12
        %v1375 = vmax.f32 %v1371, 1e-12
        %v1376 = vmax.f32 %v1372, 1e-12
        %v1377 = vrcp.pop %v1373
        %v1378 = vrcp.pop %v1374
        %v1379 = vrcp.pop %v1375
        %v1380 = vrcp.pop %v1376
        %v1381 = vmul.f32 %v1341, %v1377
        %v1382 = vmul.f32 %v1342, %v1378
        %v1383 = vmul.f32 %v1343, %v1379
        %v1384 = vmul.f32 %v1344, %v1380
        %1385 = vst [vmem:[%s241 + $0x60] sm:$0xff] %v1381
        %1386 = vst [vmem:[%s241 + $0x68] sm:$0xff] %v1382
        %1387 = vst [vmem:[%s241 + $0x70] sm:$0xff] %v1383
        %1388 = vst [vmem:[%s241 + $0x78] sm:$0xff] %v1384
        %s1389 = sand.u32 %s125, 1
        %s1390 = scalar_lea.sflag [#allocation3], %s1389
        %s1391 = sand.u32 %s125, 1
        %s1392 = smul.addr %s1391, 4
        %s1393 = scalar_lea.vmem [#allocation2], %s1392
        %s1394 = sand.u32 %s151, 1
        %s1395 = scalar_lea.sflag [#allocation5], %s1394
        %s1396 = sand.u32 %s151, 1
        %s1397 = smul.addr %s1396, 128
        %s1398 = scalar_lea.vmem [#allocation4], %s1397
        // Predicated region
        $region37: #{tpu_custom_call.1} parent=35 // pred_check
          %p1399 = pneg %p135
        $region38: #{tpu_custom_call.1} parent=35 // pred_check_branch
          %1401 = sbr.rel (%p1399) target = $region40
        $region39: #{tpu_custom_call.1} parent=35 // pred_region
          %s1403 = ssub.s32 64, 64
          %1404 = vsyncadd %s1390, %s1403
          %s1405 = smul.addr %s23, 64
          %s1406 = scalar_lea.hbm %s4, %s1405
          %s1408 = sshll.u32 %s1393, 4
          %s1409 = int_to_ptr.vmem [resolvable:$true] %s1408
          %1411 = dma.vmem_to_hbm [thread:$0]  %s1409, 64, %s1406, %s1390
        $region40: #{tpu_custom_call.1} parent=35 // pred_fallthru
          _
        // Predicated region
        $region41: #{tpu_custom_call.1} parent=35 // pred_check
          %p1412 = pneg %p161
        $region42: #{tpu_custom_call.1} parent=35 // pred_check_branch
          %1414 = sbr.rel (%p1412) target = $region44
        $region43: #{tpu_custom_call.1} parent=35 // pred_region
          %s1416 = ssub.s32 2048, 2048
          %1417 = vsyncadd %s1395, %s1416
          %s1418 = smul.addr %s23, 16
          %s1419 = smul.addr %s1418, 128
          %s1420 = scalar_lea.hbm %s5, %s1419
          %s1421 = sshll.u32 %s1398, 4
          %s1422 = int_to_ptr.vmem [resolvable:$true] %s1421
          %1427 = dma.vmem_to_hbm [thread:$0]  %s1422, 2048, %s1420, %s1395, 128, 128, 8
        $region44: #{tpu_custom_call.1} parent=35 // pred_fallthru
          _
      $region36: #{tpu_custom_call.1} parent=5 // pred_fallthru
        _
      %p1428 = scmp.le.s32.totalorder 2, %s18
      // Predicated region
      $region45: #{tpu_custom_call.1} parent=5 // pred_check
        %p1429 = pneg %p1428
      $region46: #{tpu_custom_call.1} parent=5 // pred_check_branch
        %1431 = sbr.rel (%p1429) target = $region48
      $region47: #{tpu_custom_call.1} parent=5 // pred_region
        %s1432 = ssub.s32 %s18, 2
        // Predicated region
        $region49: #{tpu_custom_call.1} parent=47 // pred_check
          %p1433 = pneg %p141
        $region50: #{tpu_custom_call.1} parent=47 // pred_check_branch
          %1435 = sbr.rel (%p1433) target = $region52
        $region51: #{tpu_custom_call.1} parent=47 // pred_region
          %s1436 = sand.u32 %s126, 1
          %s1437 = scalar_lea.sflag [#allocation3], %s1436
          %s1438 = sand.u32 %s126, 1
          %s1439 = smul.addr %s1438, 4
          %s1440 = scalar_lea.vmem [#allocation2], %s1439
          %1441 = dma.done %s1437, 64
        $region52: #{tpu_custom_call.1} parent=47 // pred_fallthru
          _
        // Predicated region
        $region53: #{tpu_custom_call.1} parent=47 // pred_check
          %p1442 = pneg %p167
        $region54: #{tpu_custom_call.1} parent=47 // pred_check_branch
          %1444 = sbr.rel (%p1442) target = $region56
        $region55: #{tpu_custom_call.1} parent=47 // pred_region
          %s1445 = sand.u32 %s152, 1
          %s1446 = scalar_lea.sflag [#allocation5], %s1445
          %s1447 = sand.u32 %s152, 1
          %s1448 = smul.addr %s1447, 128
          %s1449 = scalar_lea.vmem [#allocation4], %s1448
          %1450 = dma.done %s1446, 2048
        $region56: #{tpu_custom_call.1} parent=47 // pred_fallthru
          _
      $region48: #{tpu_custom_call.1} parent=5 // pred_fallthru
        _
    $region6: #{tpu_custom_call.1} parent=1 // loop_footer
      %s22 = sadd.s32 1, %s18
    $region7: #{tpu_custom_call.1} parent=1 // loop_footer_branch
      %17 = sbr.rel target = $region3
    $region8: #{tpu_custom_call.1} parent=1 // loop_exit
      _
    %1451 = vsyncpa [#allocation3], 1
    %s1452 = scalar_lea.sflag [#allocation3], 1
    %1453 = vsyncpa %s1452, 1
    %1454 = vsyncpa [#allocation5], 1
    %s1455 = scalar_lea.sflag [#allocation5], 1
    %1456 = vsyncpa %s1455, 1

</llo_original>
